<compile_context>
chip_gen: v7x
topology: tpu7x:2x2x1
jax: 0.10.0
libtpu: 0.0.40
codegen_flags: <defaults>
</compile_context>

<pallas_src>
from functools import partial

import jax
import jax.numpy as jnp
from jax import lax
from jax.experimental import pallas as pl
from jax.experimental.pallas import tpu as pltpu


def _attention_kernel(x_ref, wqkv_ref, bqkv_ref, wproj_ref, bproj_ref, o_ref,
                      acc_ref, *, head_dim, group, num_groups, block_b):
    """One grid step = `block_b` batch elements.

    x_ref:     (block_b, N, C)  bf16
    wqkv_ref:  (3*G, C, gw)     bf16   (Q groups pre-scaled by head_dim**-0.5)
    bqkv_ref:  (3*G, 1, gw)     f32    (Q groups pre-scaled)
    wproj_ref: (G, gw, C)       bf16
    bproj_ref: (1, C)           f32
    o_ref:     (block_b, N, C)  f32
    acc_ref:   (N, C)           f32 VMEM scratch (fused output-proj accumulator)
    """
    D = head_dim
    G = num_groups

    def batch_body(b, carry):
        xb = x_ref[b]                                              # (N, C) bf16
        # Initialize the fused output-projection accumulator with the bias.
        acc_ref[...] = jnp.broadcast_to(bproj_ref[...], acc_ref.shape)

        def group_body(g, carry_g):
            # Lane-dense per-head-group Q/K/V projections (gw lanes wide;
            # gw = 128 for ViT-Base head_dim=64 with head pairing).  All
            # dynamic indices are on the leading axis of the grouped weights.
            q = (jnp.dot(xb, wqkv_ref[g], preferred_element_type=jnp.float32)
                 + bqkv_ref[g]).astype(jnp.bfloat16)               # (N, gw)
            k = (jnp.dot(xb, wqkv_ref[G + g], preferred_element_type=jnp.float32)
                 + bqkv_ref[G + g]).astype(jnp.bfloat16)           # (N, gw)
            v = (jnp.dot(xb, wqkv_ref[2 * G + g], preferred_element_type=jnp.float32)
                 + bqkv_ref[2 * G + g]).astype(jnp.bfloat16)       # (N, gw)

            # Short, statically unrolled loop over the heads inside this group
            # (aligned halves of the lane-dense slab).
            ctx_parts = []
            for p in range(group):
                c0 = p * D
                qh = q[:, c0:c0 + D]
                kh = k[:, c0:c0 + D]
                vh = v[:, c0:c0 + D]
                # q @ k^T by contracting dim 1 of both operands (transposed-RHS
                # matmul, no explicit XLU transpose of k).
                s = lax.dot_general(qh, kh,
                                    dimension_numbers=(((1,), (1,)), ((), ())),
                                    preferred_element_type=jnp.float32)  # (N,N)
                # Numerically stable softmax in f32 (scale folded into Wq/bq).
                s = s - jnp.max(s, axis=-1, keepdims=True)
                pmat = jnp.exp(s)
                pmat = pmat * pl.reciprocal(
                    jnp.sum(pmat, axis=-1, keepdims=True), approx=True)
                ctx_parts.append(
                    jnp.dot(pmat.astype(jnp.bfloat16), vh,
                            preferred_element_type=jnp.float32).astype(jnp.bfloat16))
            ctx = ctx_parts[0] if group == 1 else jnp.concatenate(ctx_parts, axis=-1)

            # Fused output projection: accumulate this group's contribution so
            # the per-head context never hits VMEM via a masked 64-lane store.
            acc_ref[...] += jnp.dot(ctx, wproj_ref[g],
                                    preferred_element_type=jnp.float32)
            return carry_g

        lax.fori_loop(0, G, group_body, 0, unroll=False)
        o_ref[b] = acc_ref[...].astype(o_ref.dtype)
        return carry

    lax.fori_loop(0, block_b, batch_body, 0, unroll=False)


def attention_pallas(x, wqkv, wproj, bproj, bqkv=None, *, num_heads,
                     attn_drop_ratio=0.0, proj_drop_ratio=0.0,
                     out_dtype=jnp.float32):
    """x: (B, N, C) f32.  wqkv: (C, 3C), bqkv: (3C,) or None, wproj: (C, C),
    bproj: (C,).  Returns (B, N, C) matching PyTorch Attention.forward."""
    # Dropout is identity at the module's 0.0 rates; refuse otherwise.
    assert attn_drop_ratio == 0.0 and proj_drop_ratio == 0.0, \
        "dropout is not emitted in the Pallas kernel (rates must be 0.0)"

    B, N, C = x.shape
    assert C % num_heads == 0
    D = C // num_heads
    scale = D ** (-0.5)

    # Head grouping: largest divisor of num_heads with group*D <= 128 lanes
    # (ViT-Base: D=64 -> group=2 -> gw=128 lane-dense slabs).
    cap_g = max(1, 128 // D)
    group = 1
    for d in range(1, num_heads + 1):
        if num_heads % d == 0 and d <= cap_g:
            group = d
    gw = group * D
    G = num_heads // group

    if bqkv is None:
        bqkv = jnp.zeros((3 * C,), dtype=wqkv.dtype)

    # Fold the softmax scale into the Q columns of W_qkv / b_qkv (host-side).
    scale_cols = jnp.concatenate([jnp.full((C,), scale, dtype=wqkv.dtype),
                                  jnp.ones((2 * C,), dtype=wqkv.dtype)])
    wqkv_s = wqkv * scale_cols[None, :]
    bqkv_s = bqkv * scale_cols

    # Host-side re-grouping (layout plumbing, free): head-group-major slabs so
    # the kernel only ever dynamically indexes the LEADING axis.
    wqkv_g = (wqkv_s.reshape(C, 3, G, gw).transpose(1, 2, 0, 3)
              .reshape(3 * G, C, gw).astype(jnp.bfloat16))
    bqkv_g = bqkv_s.reshape(3 * G, 1, gw).astype(jnp.float32)
    wproj_g = wproj.reshape(G, gw, C).astype(jnp.bfloat16)
    bproj2d = bproj.reshape(1, C).astype(jnp.float32)

    x3 = x.astype(jnp.bfloat16)

    # Batch grouping: ~512 rows of x per grid step (amortize the ~0.35us/step
    # overhead), but keep grid_b >= 2 so both v7x TensorCores get work.
    cap_b = max(1, 512 // max(N, 1))
    if B >= 2:
        cap_b = min(cap_b, B // 2)
    block_b = 1
    for d in range(1, B + 1):
        if B % d == 0 and d <= cap_b:
            block_b = d
    grid_b = B // block_b

    # VMEM budget: leave headroom under v7x's 64 MiB; use more on v5e/v6e.
    try:
        vmem_phys = int(pltpu.get_tpu_info().vmem_capacity_bytes)
    except Exception:
        vmem_phys = 64 * 1024 * 1024
    vmem_limit = int(min(max(vmem_phys - 12 * 1024 * 1024, 32 * 1024 * 1024),
                         112 * 1024 * 1024))

    kernel = partial(_attention_kernel, head_dim=D, group=group,
                     num_groups=G, block_b=block_b)

    def _build(single_buffer_weights):
        def const_spec(shape):
            idx = lambda b, _z=(0,) * len(shape): _z
            if single_buffer_weights:
                # Grid-invariant weights: single-buffer to save VMEM.
                return pl.BlockSpec(shape, idx, pipeline_mode=pl.Buffered(1))
            return pl.BlockSpec(shape, idx)

        grid_spec = pltpu.PrefetchScalarGridSpec(
            num_scalar_prefetch=0,
            grid=(grid_b,),
            in_specs=[
                pl.BlockSpec((block_b, N, C), lambda b: (b, 0, 0)),   # x
                const_spec((3 * G, C, gw)),                           # W_qkv grouped
                const_spec((3 * G, 1, gw)),                           # b_qkv grouped
                const_spec((G, gw, C)),                               # W_proj grouped
                const_spec((1, C)),                                   # b_proj
            ],
            out_specs=pl.BlockSpec((block_b, N, C), lambda b: (b, 0, 0)),
            scratch_shapes=[pltpu.VMEM((N, C), jnp.float32)],         # proj acc
        )
        return pl.pallas_call(
            kernel,
            out_shape=jax.ShapeDtypeStruct((B, N, C), out_dtype),
            grid_spec=grid_spec,
            compiler_params=pltpu.CompilerParams(
                dimension_semantics=("parallel",),
                vmem_limit_bytes=vmem_limit,
            ),
        )

    args = (x3, wqkv_g, bqkv_g, wproj_g, bproj2d)
    try:
        out = jax.block_until_ready(_build(True)(*args))
    except Exception:
        # Fallback for JAX versions without BlockSpec(pipeline_mode=...).
        out = _build(False)(*args)
    return out


def attention_reference(x, wqkv, wproj, bproj, bqkv=None, *, num_heads):
    """Pure-JAX (f32) reference replicating the PyTorch forward semantics."""
    B, N, C = x.shape
    D = C // num_heads
    scale = D ** (-0.5)
    if bqkv is None:
        bqkv = jnp.zeros((3 * C,), x.dtype)
    qkv = (x @ wqkv + bqkv).reshape(B, N, 3, num_heads, D).transpose(2, 0, 3, 1, 4)
    q, k, v = qkv[0], qkv[1], qkv[2]                      # (B, H, N, D)
    attn = (q @ jnp.swapaxes(k, -2, -1)) * scale          # (B, H, N, N)
    attn = jax.nn.softmax(attn, axis=-1)
    out = (attn @ v).transpose(0, 2, 1, 3).reshape(B, N, C)
    return out @ wproj + bproj


if __name__ == "__main__":
    # Small shapes consistent with the module: B=2, tokens N=8, dim C=32, 4 heads.
    B, N, C = 2, 8, 32
    num_heads = 4

    key = jax.random.PRNGKey(0)
    kx, kqkv, kbq, kproj, kb = jax.random.split(key, 5)

    x = jax.random.normal(kx, (B, N, C), dtype=jnp.float32)
    wqkv = jax.random.normal(kqkv, (C, 3 * C), dtype=jnp.float32) * 0.05
    bqkv = jax.random.normal(kbq, (3 * C,), dtype=jnp.float32) * 0.05   # qkv_bias=True (as in VisionTransformer)
    wproj = jax.random.normal(kproj, (C, C), dtype=jnp.float32) * 0.05
    bproj = jax.random.normal(kb, (C,), dtype=jnp.float32) * 0.05

    out = attention_pallas(x, wqkv, wproj, bproj, bqkv, num_heads=num_heads)
    out = jax.block_until_ready(out)

    ref = attention_reference(x, wqkv, wproj, bproj, bqkv, num_heads=num_heads)
    assert out.shape == (B, N, C)
    # bf16 matmul operands + approx reciprocal -> slightly looser tolerance.
    assert jnp.allclose(out, ref, atol=2e-2, rtol=2e-2), "mismatch vs reference"

    print("KERNEL_OK")
</pallas_src>

<mosaic_0001>
module attributes {stable_mosaic.version = 11 : i64} {
  func.func @_attention_kernel(%arg0: i32, %arg1: memref<1x8x32xbf16, #tpu.memory_space<vmem>>, %arg2: memref<3x32x32xbf16, #tpu.memory_space<vmem>>, %arg3: memref<3x1x32xf32, #tpu.memory_space<vmem>>, %arg4: memref<1x32x32xbf16, #tpu.memory_space<vmem>>, %arg5: memref<1x32xf32, #tpu.memory_space<vmem>>, %arg6: memref<1x8x32xf32, #tpu.memory_space<vmem>>, %arg7: memref<8x32xf32, #tpu.memory_space<vmem>>) attributes {dimension_semantics = [#tpu.dimension_semantics<parallel>], iteration_bounds = array<i64: 2>, scalar_prefetch = 0 : i64, scratch_operands = 1 : i64, tpu.core_type = #tpu.core_type<tc>, window_params = [{transform_indices = @transform_0, window_bounds = array<i64: 1, 8, 32>}, {pipeline_mode = #tpu.pipeline_mode<synchronous>, transform_indices = @transform_1, window_bounds = array<i64: 3, 32, 32>}, {pipeline_mode = #tpu.pipeline_mode<synchronous>, transform_indices = @transform_2, window_bounds = array<i64: 3, 1, 32>}, {pipeline_mode = #tpu.pipeline_mode<synchronous>, transform_indices = @transform_3, window_bounds = array<i64: 1, 32, 32>}, {pipeline_mode = #tpu.pipeline_mode<synchronous>, transform_indices = @transform_4, window_bounds = array<i64: 1, 32>}, {transform_indices = @transform_5, window_bounds = array<i64: 1, 8, 32>}]} {
    %c0_i32 = arith.constant 0 : i32
    %0 = arith.index_cast %c0_i32 : i32 to index
    %c0 = arith.constant 0 : index
    %c0_0 = arith.constant 0 : index
    %1 = vector.load %arg1[%0, %c0, %c0_0] : memref<1x8x32xbf16, #tpu.memory_space<vmem>>, vector<1x8x32xbf16>
    %2 = vector.shape_cast %1 : vector<1x8x32xbf16> to vector<8x32xbf16>
    %c0_1 = arith.constant 0 : index
    %c0_2 = arith.constant 0 : index
    %3 = vector.load %arg5[%c0_1, %c0_2] : memref<1x32xf32, #tpu.memory_space<vmem>>, vector<1x32xf32>
    %4 = vector.shape_cast %3 : vector<1x32xf32> to vector<1x32xf32>
    %5 = vector.broadcast %4 : vector<1x32xf32> to vector<8x32xf32>
    %c0_3 = arith.constant 0 : index
    %c0_4 = arith.constant 0 : index
    %6 = vector.load %arg7[%c0_3, %c0_4] : memref<8x32xf32, #tpu.memory_space<vmem>>, vector<8x32xf32>
    tpu.vector_store %arg7[%c0_3, %c0_4], %5 {strides = array<i32>} : memref<8x32xf32, #tpu.memory_space<vmem>>, vector<8x32xf32>,
    %c0_i32_5 = arith.constant 0 : i32
    %7 = arith.index_cast %c0_i32_5 : i32 to index
    %c0_6 = arith.constant 0 : index
    %c0_7 = arith.constant 0 : index
    %8 = vector.load %arg2[%7, %c0_6, %c0_7] : memref<3x32x32xbf16, #tpu.memory_space<vmem>>, vector<1x32x32xbf16>
    %9 = vector.shape_cast %8 : vector<1x32x32xbf16> to vector<32x32xbf16>
    %cst = arith.constant dense<0.000000e+00> : vector<8x32xf32>
    %10 = tpu.matmul %2, %9, %cst {dimension_numbers = #tpu.dot_dimension_numbers<[1], [0], [0], [1], [0, 0, 1, 1], [], []>} : vector<8x32xbf16>, vector<32x32xbf16>, vector<8x32xf32> -> vector<8x32xf32>
    %11 = arith.index_cast %c0_i32_5 : i32 to index
    %c0_8 = arith.constant 0 : index
    %c0_9 = arith.constant 0 : index
    %12 = vector.load %arg3[%11, %c0_8, %c0_9] : memref<3x1x32xf32, #tpu.memory_space<vmem>>, vector<1x1x32xf32>
    %13 = vector.shape_cast %12 : vector<1x1x32xf32> to vector<1x32xf32>
    %14 = vector.broadcast %13 : vector<1x32xf32> to vector<8x32xf32>
    %15 = arith.addf %10, %14 : vector<8x32xf32>
    %16 = arith.truncf %15 : vector<8x32xf32> to vector<8x32xbf16>
    %c1_i32 = arith.constant 1 : i32
    %17 = arith.addi %c1_i32, %c0_i32_5 : i32
    %18 = arith.index_cast %17 : i32 to index
    %c0_10 = arith.constant 0 : index
    %c0_11 = arith.constant 0 : index
    %19 = vector.load %arg2[%18, %c0_10, %c0_11] : memref<3x32x32xbf16, #tpu.memory_space<vmem>>, vector<1x32x32xbf16>
    %20 = vector.shape_cast %19 : vector<1x32x32xbf16> to vector<32x32xbf16>
    %cst_12 = arith.constant dense<0.000000e+00> : vector<8x32xf32>
    %21 = tpu.matmul %2, %20, %cst_12 {dimension_numbers = #tpu.dot_dimension_numbers<[1], [0], [0], [1], [0, 0, 1, 1], [], []>} : vector<8x32xbf16>, vector<32x32xbf16>, vector<8x32xf32> -> vector<8x32xf32>
    %c1_i32_13 = arith.constant 1 : i32
    %22 = arith.addi %c1_i32_13, %c0_i32_5 : i32
    %23 = arith.index_cast %22 : i32 to index
    %c0_14 = arith.constant 0 : index
    %c0_15 = arith.constant 0 : index
    %24 = vector.load %arg3[%23, %c0_14, %c0_15] : memref<3x1x32xf32, #tpu.memory_space<vmem>>, vector<1x1x32xf32>
    %25 = vector.shape_cast %24 : vector<1x1x32xf32> to vector<1x32xf32>
    %26 = vector.broadcast %25 : vector<1x32xf32> to vector<8x32xf32>
    %27 = arith.addf %21, %26 : vector<8x32xf32>
    %28 = arith.truncf %27 : vector<8x32xf32> to vector<8x32xbf16>
    %c2_i32 = arith.constant 2 : i32
    %29 = arith.addi %c2_i32, %c0_i32_5 : i32
    %30 = arith.index_cast %29 : i32 to index
    %c0_16 = arith.constant 0 : index
    %c0_17 = arith.constant 0 : index
    %31 = vector.load %arg2[%30, %c0_16, %c0_17] : memref<3x32x32xbf16, #tpu.memory_space<vmem>>, vector<1x32x32xbf16>
    %32 = vector.shape_cast %31 : vector<1x32x32xbf16> to vector<32x32xbf16>
    %cst_18 = arith.constant dense<0.000000e+00> : vector<8x32xf32>
    %33 = tpu.matmul %2, %32, %cst_18 {dimension_numbers = #tpu.dot_dimension_numbers<[1], [0], [0], [1], [0, 0, 1, 1], [], []>} : vector<8x32xbf16>, vector<32x32xbf16>, vector<8x32xf32> -> vector<8x32xf32>
    %c2_i32_19 = arith.constant 2 : i32
    %34 = arith.addi %c2_i32_19, %c0_i32_5 : i32
    %35 = arith.index_cast %34 : i32 to index
    %c0_20 = arith.constant 0 : index
    %c0_21 = arith.constant 0 : index
    %36 = vector.load %arg3[%35, %c0_20, %c0_21] : memref<3x1x32xf32, #tpu.memory_space<vmem>>, vector<1x1x32xf32>
    %37 = vector.shape_cast %36 : vector<1x1x32xf32> to vector<1x32xf32>
    %38 = vector.broadcast %37 : vector<1x32xf32> to vector<8x32xf32>
    %39 = arith.addf %33, %38 : vector<8x32xf32>
    %40 = arith.truncf %39 : vector<8x32xf32> to vector<8x32xbf16>
    %41 = vector.extract_strided_slice %16 {offsets = [0, 0], sizes = [8, 8], strides = [1, 1]} : vector<8x32xbf16> to vector<8x8xbf16>
    %42 = vector.extract_strided_slice %28 {offsets = [0, 0], sizes = [8, 8], strides = [1, 1]} : vector<8x32xbf16> to vector<8x8xbf16>
    %43 = vector.extract_strided_slice %40 {offsets = [0, 0], sizes = [8, 8], strides = [1, 1]} : vector<8x32xbf16> to vector<8x8xbf16>
    %cst_22 = arith.constant dense<0.000000e+00> : vector<8x8xf32>
    %44 = tpu.matmul %41, %42, %cst_22 {dimension_numbers = #tpu.dot_dimension_numbers<[1], [1], [0], [0], [0, 0, 1, 0], [], []>} : vector<8x8xbf16>, vector<8x8xbf16>, vector<8x8xf32> -> vector<8x8xf32>
    %cst_23 = arith.constant dense<0xFF800000> : vector<8xf32>
    %45 = vector.multi_reduction <maximumf>, %44, %cst_23 [1] : vector<8x8xf32> to vector<8xf32>
    %46 = vector.shape_cast %45 : vector<8xf32> to vector<8x1xf32>
    %47 = vector.broadcast %46 : vector<8x1xf32> to vector<8x8xf32>
    %48 = arith.subf %44, %47 : vector<8x8xf32>
    %49 = math.exp %48 : vector<8x8xf32>
    %cst_24 = arith.constant dense<0.000000e+00> : vector<8xf32>
    %50 = vector.multi_reduction <add>, %49, %cst_24 [1] : vector<8x8xf32> to vector<8xf32>
    %51 = vector.shape_cast %50 : vector<8xf32> to vector<8x1xf32>
    %52 = tpu.reciprocal %51 {approx = true} : vector<8x1xf32> -> vector<8x1xf32>
    %53 = vector.broadcast %52 : vector<8x1xf32> to vector<8x8xf32>
    %54 = arith.mulf %49, %53 : vector<8x8xf32>
    %55 = arith.truncf %54 : vector<8x8xf32> to vector<8x8xbf16>
    %cst_25 = arith.constant dense<0.000000e+00> : vector<8x8xf32>
    %56 = tpu.matmul %55, %43, %cst_25 {dimension_numbers = #tpu.dot_dimension_numbers<[1], [0], [0], [1], [0, 0, 1, 1], [], []>} : vector<8x8xbf16>, vector<8x8xbf16>, vector<8x8xf32> -> vector<8x8xf32>
    %57 = arith.truncf %56 : vector<8x8xf32> to vector<8x8xbf16>
    %58 = vector.extract_strided_slice %16 {offsets = [0, 8], sizes = [8, 8], strides = [1, 1]} : vector<8x32xbf16> to vector<8x8xbf16>
    %59 = vector.extract_strided_slice %28 {offsets = [0, 8], sizes = [8, 8], strides = [1, 1]} : vector<8x32xbf16> to vector<8x8xbf16>
    %60 = vector.extract_strided_slice %40 {offsets = [0, 8], sizes = [8, 8], strides = [1, 1]} : vector<8x32xbf16> to vector<8x8xbf16>
    %cst_26 = arith.constant dense<0.000000e+00> : vector<8x8xf32>
    %61 = tpu.matmul %58, %59, %cst_26 {dimension_numbers = #tpu.dot_dimension_numbers<[1], [1], [0], [0], [0, 0, 1, 0], [], []>} : vector<8x8xbf16>, vector<8x8xbf16>, vector<8x8xf32> -> vector<8x8xf32>
    %cst_27 = arith.constant dense<0xFF800000> : vector<8xf32>
    %62 = vector.multi_reduction <maximumf>, %61, %cst_27 [1] : vector<8x8xf32> to vector<8xf32>
    %63 = vector.shape_cast %62 : vector<8xf32> to vector<8x1xf32>
    %64 = vector.broadcast %63 : vector<8x1xf32> to vector<8x8xf32>
    %65 = arith.subf %61, %64 : vector<8x8xf32>
    %66 = math.exp %65 : vector<8x8xf32>
    %cst_28 = arith.constant dense<0.000000e+00> : vector<8xf32>
    %67 = vector.multi_reduction <add>, %66, %cst_28 [1] : vector<8x8xf32> to vector<8xf32>
    %68 = vector.shape_cast %67 : vector<8xf32> to vector<8x1xf32>
    %69 = tpu.reciprocal %68 {approx = true} : vector<8x1xf32> -> vector<8x1xf32>
    %70 = vector.broadcast %69 : vector<8x1xf32> to vector<8x8xf32>
    %71 = arith.mulf %66, %70 : vector<8x8xf32>
    %72 = arith.truncf %71 : vector<8x8xf32> to vector<8x8xbf16>
    %cst_29 = arith.constant dense<0.000000e+00> : vector<8x8xf32>
    %73 = tpu.matmul %72, %60, %cst_29 {dimension_numbers = #tpu.dot_dimension_numbers<[1], [0], [0], [1], [0, 0, 1, 1], [], []>} : vector<8x8xbf16>, vector<8x8xbf16>, vector<8x8xf32> -> vector<8x8xf32>
    %74 = arith.truncf %73 : vector<8x8xf32> to vector<8x8xbf16>
    %75 = vector.extract_strided_slice %16 {offsets = [0, 16], sizes = [8, 8], strides = [1, 1]} : vector<8x32xbf16> to vector<8x8xbf16>
    %76 = vector.extract_strided_slice %28 {offsets = [0, 16], sizes = [8, 8], strides = [1, 1]} : vector<8x32xbf16> to vector<8x8xbf16>
    %77 = vector.extract_strided_slice %40 {offsets = [0, 16], sizes = [8, 8], strides = [1, 1]} : vector<8x32xbf16> to vector<8x8xbf16>
    %cst_30 = arith.constant dense<0.000000e+00> : vector<8x8xf32>
    %78 = tpu.matmul %75, %76, %cst_30 {dimension_numbers = #tpu.dot_dimension_numbers<[1], [1], [0], [0], [0, 0, 1, 0], [], []>} : vector<8x8xbf16>, vector<8x8xbf16>, vector<8x8xf32> -> vector<8x8xf32>
    %cst_31 = arith.constant dense<0xFF800000> : vector<8xf32>
    %79 = vector.multi_reduction <maximumf>, %78, %cst_31 [1] : vector<8x8xf32> to vector<8xf32>
    %80 = vector.shape_cast %79 : vector<8xf32> to vector<8x1xf32>
    %81 = vector.broadcast %80 : vector<8x1xf32> to vector<8x8xf32>
    %82 = arith.subf %78, %81 : vector<8x8xf32>
    %83 = math.exp %82 : vector<8x8xf32>
    %cst_32 = arith.constant dense<0.000000e+00> : vector<8xf32>
    %84 = vector.multi_reduction <add>, %83, %cst_32 [1] : vector<8x8xf32> to vector<8xf32>
    %85 = vector.shape_cast %84 : vector<8xf32> to vector<8x1xf32>
    %86 = tpu.reciprocal %85 {approx = true} : vector<8x1xf32> -> vector<8x1xf32>
    %87 = vector.broadcast %86 : vector<8x1xf32> to vector<8x8xf32>
    %88 = arith.mulf %83, %87 : vector<8x8xf32>
    %89 = arith.truncf %88 : vector<8x8xf32> to vector<8x8xbf16>
    %cst_33 = arith.constant dense<0.000000e+00> : vector<8x8xf32>
    %90 = tpu.matmul %89, %77, %cst_33 {dimension_numbers = #tpu.dot_dimension_numbers<[1], [0], [0], [1], [0, 0, 1, 1], [], []>} : vector<8x8xbf16>, vector<8x8xbf16>, vector<8x8xf32> -> vector<8x8xf32>
    %91 = arith.truncf %90 : vector<8x8xf32> to vector<8x8xbf16>
    %92 = vector.extract_strided_slice %16 {offsets = [0, 24], sizes = [8, 8], strides = [1, 1]} : vector<8x32xbf16> to vector<8x8xbf16>
    %93 = vector.extract_strided_slice %28 {offsets = [0, 24], sizes = [8, 8], strides = [1, 1]} : vector<8x32xbf16> to vector<8x8xbf16>
    %94 = vector.extract_strided_slice %40 {offsets = [0, 24], sizes = [8, 8], strides = [1, 1]} : vector<8x32xbf16> to vector<8x8xbf16>
    %cst_34 = arith.constant dense<0.000000e+00> : vector<8x8xf32>
    %95 = tpu.matmul %92, %93, %cst_34 {dimension_numbers = #tpu.dot_dimension_numbers<[1], [1], [0], [0], [0, 0, 1, 0], [], []>} : vector<8x8xbf16>, vector<8x8xbf16>, vector<8x8xf32> -> vector<8x8xf32>
    %cst_35 = arith.constant dense<0xFF800000> : vector<8xf32>
    %96 = vector.multi_reduction <maximumf>, %95, %cst_35 [1] : vector<8x8xf32> to vector<8xf32>
    %97 = vector.shape_cast %96 : vector<8xf32> to vector<8x1xf32>
    %98 = vector.broadcast %97 : vector<8x1xf32> to vector<8x8xf32>
    %99 = arith.subf %95, %98 : vector<8x8xf32>
    %100 = math.exp %99 : vector<8x8xf32>
    %cst_36 = arith.constant dense<0.000000e+00> : vector<8xf32>
    %101 = vector.multi_reduction <add>, %100, %cst_36 [1] : vector<8x8xf32> to vector<8xf32>
    %102 = vector.shape_cast %101 : vector<8xf32> to vector<8x1xf32>
    %103 = tpu.reciprocal %102 {approx = true} : vector<8x1xf32> -> vector<8x1xf32>
    %104 = vector.broadcast %103 : vector<8x1xf32> to vector<8x8xf32>
    %105 = arith.mulf %100, %104 : vector<8x8xf32>
    %106 = arith.truncf %105 : vector<8x8xf32> to vector<8x8xbf16>
    %cst_37 = arith.constant dense<0.000000e+00> : vector<8x8xf32>
    %107 = tpu.matmul %106, %94, %cst_37 {dimension_numbers = #tpu.dot_dimension_numbers<[1], [0], [0], [1], [0, 0, 1, 1], [], []>} : vector<8x8xbf16>, vector<8x8xbf16>, vector<8x8xf32> -> vector<8x8xf32>
    %108 = arith.truncf %107 : vector<8x8xf32> to vector<8x8xbf16>
    %109 = tpu.concatenate %57, %74, %91, %108 in 1 : vector<8x8xbf16>, vector<8x8xbf16>, vector<8x8xbf16>, vector<8x8xbf16> -> vector<8x32xbf16>
    %c0_38 = arith.constant 0 : index
    %c0_39 = arith.constant 0 : index
    %110 = vector.load %arg7[%c0_38, %c0_39] : memref<8x32xf32, #tpu.memory_space<vmem>>, vector<8x32xf32>
    %111 = arith.index_cast %c0_i32_5 : i32 to index
    %c0_40 = arith.constant 0 : index
    %c0_41 = arith.constant 0 : index
    %112 = vector.load %arg4[%111, %c0_40, %c0_41] : memref<1x32x32xbf16, #tpu.memory_space<vmem>>, vector<1x32x32xbf16>
    %113 = vector.shape_cast %112 : vector<1x32x32xbf16> to vector<32x32xbf16>
    %cst_42 = arith.constant dense<0.000000e+00> : vector<8x32xf32>
    %114 = tpu.matmul %109, %113, %cst_42 {dimension_numbers = #tpu.dot_dimension_numbers<[1], [0], [0], [1], [0, 0, 1, 1], [], []>} : vector<8x32xbf16>, vector<32x32xbf16>, vector<8x32xf32> -> vector<8x32xf32>
    %115 = arith.addf %110, %114 : vector<8x32xf32>
    %c0_43 = arith.constant 0 : index
    %c0_44 = arith.constant 0 : index
    %116 = vector.load %arg7[%c0_43, %c0_44] : memref<8x32xf32, #tpu.memory_space<vmem>>, vector<8x32xf32>
    tpu.vector_store %arg7[%c0_43, %c0_44], %115 {strides = array<i32>} : memref<8x32xf32, #tpu.memory_space<vmem>>, vector<8x32xf32>,
    %c1_i32_45 = arith.constant 1 : i32
    %c0_46 = arith.constant 0 : index
    %c0_47 = arith.constant 0 : index
    %117 = vector.load %arg7[%c0_46, %c0_47] : memref<8x32xf32, #tpu.memory_space<vmem>>, vector<8x32xf32>
    %118 = arith.index_cast %c0_i32 : i32 to index
    %c0_48 = arith.constant 0 : index
    %c0_49 = arith.constant 0 : index
    %119 = vector.load %arg6[%118, %c0_48, %c0_49] : memref<1x8x32xf32, #tpu.memory_space<vmem>>, vector<1x8x32xf32>
    %120 = vector.shape_cast %119 : vector<1x8x32xf32> to vector<8x32xf32>
    %121 = vector.shape_cast %117 : vector<8x32xf32> to vector<1x8x32xf32>
    tpu.vector_store %arg6[%118, %c0_48, %c0_49], %121 {strides = array<i32>} : memref<1x8x32xf32, #tpu.memory_space<vmem>>, vector<1x8x32xf32>,
    %c1_i32_50 = arith.constant 1 : i32
    return
  }
  func.func @transform_0(%arg0: i32) -> (i32, i32, i32) {
    %c0_i32 = arith.constant 0 : i32
    %c0_i32_0 = arith.constant 0 : i32
    %c0_i32_1 = arith.constant 0 : i32
    return %arg0, %c0_i32, %c0_i32_0 : i32, i32, i32
  }
  func.func @transform_1(%arg0: i32) -> (i32, i32, i32) {
    %c0_i32 = arith.constant 0 : i32
    %c0_i32_0 = arith.constant 0 : i32
    %c0_i32_1 = arith.constant 0 : i32
    %c0_i32_2 = arith.constant 0 : i32
    return %c0_i32, %c0_i32_0, %c0_i32_1 : i32, i32, i32
  }
  func.func @transform_2(%arg0: i32) -> (i32, i32, i32) {
    %c0_i32 = arith.constant 0 : i32
    %c0_i32_0 = arith.constant 0 : i32
    %c0_i32_1 = arith.constant 0 : i32
    %c0_i32_2 = arith.constant 0 : i32
    return %c0_i32, %c0_i32_0, %c0_i32_1 : i32, i32, i32
  }
  func.func @transform_3(%arg0: i32) -> (i32, i32, i32) {
    %c0_i32 = arith.constant 0 : i32
    %c0_i32_0 = arith.constant 0 : i32
    %c0_i32_1 = arith.constant 0 : i32
    %c0_i32_2 = arith.constant 0 : i32
    return %c0_i32, %c0_i32_0, %c0_i32_1 : i32, i32, i32
  }
  func.func @transform_4(%arg0: i32) -> (i32, i32) {
    %c0_i32 = arith.constant 0 : i32
    %c0_i32_0 = arith.constant 0 : i32
    %c0_i32_1 = arith.constant 0 : i32
    return %c0_i32, %c0_i32_0 : i32, i32
  }
  func.func @transform_5(%arg0: i32) -> (i32, i32, i32) {
    %c0_i32 = arith.constant 0 : i32
    %c0_i32_0 = arith.constant 0 : i32
    %c0_i32_1 = arith.constant 0 : i32
    return %arg0, %c0_i32, %c0_i32_0 : i32, i32, i32
  }
}

module attributes {stable_mosaic.version = 11 : i64} {
  func.func @_attention_kernel(%arg0: i32, %arg1: memref<1x8x32xbf16, #tpu.memory_space<vmem>>, %arg2: memref<3x32x32xbf16, #tpu.memory_space<vmem>>, %arg3: memref<3x1x32xf32, #tpu.memory_space<vmem>>, %arg4: memref<1x32x32xbf16, #tpu.memory_space<vmem>>, %arg5: memref<1x32xf32, #tpu.memory_space<vmem>>, %arg6: memref<1x8x32xf32, #tpu.memory_space<vmem>>, %arg7: memref<8x32xf32, #tpu.memory_space<vmem>>) attributes {dimension_semantics = [#tpu.dimension_semantics<parallel>], iteration_bounds = array<i64: 2>, scalar_prefetch = 0 : i64, scratch_operands = 1 : i64, tpu.core_type = #tpu.core_type<tc>, window_params = [{transform_indices = @transform_0, window_bounds = array<i64: 1, 8, 32>}, {pipeline_mode = #tpu.pipeline_mode<synchronous>, transform_indices = @transform_1, window_bounds = array<i64: 3, 32, 32>}, {pipeline_mode = #tpu.pipeline_mode<synchronous>, transform_indices = @transform_2, window_bounds = array<i64: 3, 1, 32>}, {pipeline_mode = #tpu.pipeline_mode<synchronous>, transform_indices = @transform_3, window_bounds = array<i64: 1, 32, 32>}, {pipeline_mode = #tpu.pipeline_mode<synchronous>, transform_indices = @transform_4, window_bounds = array<i64: 1, 32>}, {transform_indices = @transform_5, window_bounds = array<i64: 1, 8, 32>}]} {
    %c0_i32 = arith.constant 0 : i32
    %0 = arith.index_cast %c0_i32 : i32 to index
    %c0 = arith.constant 0 : index
    %c0_0 = arith.constant 0 : index
    %1 = vector.load %arg1[%0, %c0, %c0_0] : memref<1x8x32xbf16, #tpu.memory_space<vmem>>, vector<1x8x32xbf16>
    %2 = vector.shape_cast %1 : vector<1x8x32xbf16> to vector<8x32xbf16>
    %c0_1 = arith.constant 0 : index
    %c0_2 = arith.constant 0 : index
    %3 = vector.load %arg5[%c0_1, %c0_2] : memref<1x32xf32, #tpu.memory_space<vmem>>, vector<1x32xf32>
    %4 = vector.shape_cast %3 : vector<1x32xf32> to vector<1x32xf32>
    %5 = vector.broadcast %4 : vector<1x32xf32> to vector<8x32xf32>
    %c0_3 = arith.constant 0 : index
    %c0_4 = arith.constant 0 : index
    %6 = vector.load %arg7[%c0_3, %c0_4] : memref<8x32xf32, #tpu.memory_space<vmem>>, vector<8x32xf32>
    tpu.vector_store %arg7[%c0_3, %c0_4], %5 {strides = array<i32>} : memref<8x32xf32, #tpu.memory_space<vmem>>, vector<8x32xf32>,
    %c0_i32_5 = arith.constant 0 : i32
    %7 = arith.index_cast %c0_i32_5 : i32 to index
    %c0_6 = arith.constant 0 : index
    %c0_7 = arith.constant 0 : index
    %8 = vector.load %arg2[%7, %c0_6, %c0_7] : memref<3x32x32xbf16, #tpu.memory_space<vmem>>, vector<1x32x32xbf16>
    %9 = vector.shape_cast %8 : vector<1x32x32xbf16> to vector<32x32xbf16>
    %cst = arith.constant dense<0.000000e+00> : vector<8x32xf32>
    %10 = tpu.matmul %2, %9, %cst {dimension_numbers = #tpu.dot_dimension_numbers<[1], [0], [0], [1], [0, 0, 1, 1], [], []>} : vector<8x32xbf16>, vector<32x32xbf16>, vector<8x32xf32> -> vector<8x32xf32>
    %11 = arith.index_cast %c0_i32_5 : i32 to index
    %c0_8 = arith.constant 0 : index
    %c0_9 = arith.constant 0 : index
    %12 = vector.load %arg3[%11, %c0_8, %c0_9] : memref<3x1x32xf32, #tpu.memory_space<vmem>>, vector<1x1x32xf32>
    %13 = vector.shape_cast %12 : vector<1x1x32xf32> to vector<1x32xf32>
    %14 = vector.broadcast %13 : vector<1x32xf32> to vector<8x32xf32>
    %15 = arith.addf %10, %14 : vector<8x32xf32>
    %16 = arith.truncf %15 : vector<8x32xf32> to vector<8x32xbf16>
    %c1_i32 = arith.constant 1 : i32
    %17 = arith.addi %c1_i32, %c0_i32_5 : i32
    %18 = arith.index_cast %17 : i32 to index
    %c0_10 = arith.constant 0 : index
    %c0_11 = arith.constant 0 : index
    %19 = vector.load %arg2[%18, %c0_10, %c0_11] : memref<3x32x32xbf16, #tpu.memory_space<vmem>>, vector<1x32x32xbf16>
    %20 = vector.shape_cast %19 : vector<1x32x32xbf16> to vector<32x32xbf16>
    %cst_12 = arith.constant dense<0.000000e+00> : vector<8x32xf32>
    %21 = tpu.matmul %2, %20, %cst_12 {dimension_numbers = #tpu.dot_dimension_numbers<[1], [0], [0], [1], [0, 0, 1, 1], [], []>} : vector<8x32xbf16>, vector<32x32xbf16>, vector<8x32xf32> -> vector<8x32xf32>
    %c1_i32_13 = arith.constant 1 : i32
    %22 = arith.addi %c1_i32_13, %c0_i32_5 : i32
    %23 = arith.index_cast %22 : i32 to index
    %c0_14 = arith.constant 0 : index
    %c0_15 = arith.constant 0 : index
    %24 = vector.load %arg3[%23, %c0_14, %c0_15] : memref<3x1x32xf32, #tpu.memory_space<vmem>>, vector<1x1x32xf32>
    %25 = vector.shape_cast %24 : vector<1x1x32xf32> to vector<1x32xf32>
    %26 = vector.broadcast %25 : vector<1x32xf32> to vector<8x32xf32>
    %27 = arith.addf %21, %26 : vector<8x32xf32>
    %28 = arith.truncf %27 : vector<8x32xf32> to vector<8x32xbf16>
    %c2_i32 = arith.constant 2 : i32
    %29 = arith.addi %c2_i32, %c0_i32_5 : i32
    %30 = arith.index_cast %29 : i32 to index
    %c0_16 = arith.constant 0 : index
    %c0_17 = arith.constant 0 : index
    %31 = vector.load %arg2[%30, %c0_16, %c0_17] : memref<3x32x32xbf16, #tpu.memory_space<vmem>>, vector<1x32x32xbf16>
    %32 = vector.shape_cast %31 : vector<1x32x32xbf16> to vector<32x32xbf16>
    %cst_18 = arith.constant dense<0.000000e+00> : vector<8x32xf32>
    %33 = tpu.matmul %2, %32, %cst_18 {dimension_numbers = #tpu.dot_dimension_numbers<[1], [0], [0], [1], [0, 0, 1, 1], [], []>} : vector<8x32xbf16>, vector<32x32xbf16>, vector<8x32xf32> -> vector<8x32xf32>
    %c2_i32_19 = arith.constant 2 : i32
    %34 = arith.addi %c2_i32_19, %c0_i32_5 : i32
    %35 = arith.index_cast %34 : i32 to index
    %c0_20 = arith.constant 0 : index
    %c0_21 = arith.constant 0 : index
    %36 = vector.load %arg3[%35, %c0_20, %c0_21] : memref<3x1x32xf32, #tpu.memory_space<vmem>>, vector<1x1x32xf32>
    %37 = vector.shape_cast %36 : vector<1x1x32xf32> to vector<1x32xf32>
    %38 = vector.broadcast %37 : vector<1x32xf32> to vector<8x32xf32>
    %39 = arith.addf %33, %38 : vector<8x32xf32>
    %40 = arith.truncf %39 : vector<8x32xf32> to vector<8x32xbf16>
    %41 = vector.extract_strided_slice %16 {offsets = [0, 0], sizes = [8, 8], strides = [1, 1]} : vector<8x32xbf16> to vector<8x8xbf16>
    %42 = vector.extract_strided_slice %28 {offsets = [0, 0], sizes = [8, 8], strides = [1, 1]} : vector<8x32xbf16> to vector<8x8xbf16>
    %43 = vector.extract_strided_slice %40 {offsets = [0, 0], sizes = [8, 8], strides = [1, 1]} : vector<8x32xbf16> to vector<8x8xbf16>
    %cst_22 = arith.constant dense<0.000000e+00> : vector<8x8xf32>
    %44 = tpu.matmul %41, %42, %cst_22 {dimension_numbers = #tpu.dot_dimension_numbers<[1], [1], [0], [0], [0, 0, 1, 0], [], []>} : vector<8x8xbf16>, vector<8x8xbf16>, vector<8x8xf32> -> vector<8x8xf32>
    %cst_23 = arith.constant dense<0xFF800000> : vector<8xf32>
    %45 = vector.multi_reduction <maximumf>, %44, %cst_23 [1] : vector<8x8xf32> to vector<8xf32>
    %46 = vector.shape_cast %45 : vector<8xf32> to vector<8x1xf32>
    %47 = vector.broadcast %46 : vector<8x1xf32> to vector<8x8xf32>
    %48 = arith.subf %44, %47 : vector<8x8xf32>
    %49 = math.exp %48 : vector<8x8xf32>
    %cst_24 = arith.constant dense<0.000000e+00> : vector<8xf32>
    %50 = vector.multi_reduction <add>, %49, %cst_24 [1] : vector<8x8xf32> to vector<8xf32>
    %51 = vector.shape_cast %50 : vector<8xf32> to vector<8x1xf32>
    %52 = tpu.reciprocal %51 {approx = true} : vector<8x1xf32> -> vector<8x1xf32>
    %53 = vector.broadcast %52 : vector<8x1xf32> to vector<8x8xf32>
    %54 = arith.mulf %49, %53 : vector<8x8xf32>
    %55 = arith.truncf %54 : vector<8x8xf32> to vector<8x8xbf16>
    %cst_25 = arith.constant dense<0.000000e+00> : vector<8x8xf32>
    %56 = tpu.matmul %55, %43, %cst_25 {dimension_numbers = #tpu.dot_dimension_numbers<[1], [0], [0], [1], [0, 0, 1, 1], [], []>} : vector<8x8xbf16>, vector<8x8xbf16>, vector<8x8xf32> -> vector<8x8xf32>
    %57 = arith.truncf %56 : vector<8x8xf32> to vector<8x8xbf16>
    %58 = vector.extract_strided_slice %16 {offsets = [0, 8], sizes = [8, 8], strides = [1, 1]} : vector<8x32xbf16> to vector<8x8xbf16>
    %59 = vector.extract_strided_slice %28 {offsets = [0, 8], sizes = [8, 8], strides = [1, 1]} : vector<8x32xbf16> to vector<8x8xbf16>
    %60 = vector.extract_strided_slice %40 {offsets = [0, 8], sizes = [8, 8], strides = [1, 1]} : vector<8x32xbf16> to vector<8x8xbf16>
    %cst_26 = arith.constant dense<0.000000e+00> : vector<8x8xf32>
    %61 = tpu.matmul %58, %59, %cst_26 {dimension_numbers = #tpu.dot_dimension_numbers<[1], [1], [0], [0], [0, 0, 1, 0], [], []>} : vector<8x8xbf16>, vector<8x8xbf16>, vector<8x8xf32> -> vector<8x8xf32>
    %cst_27 = arith.constant dense<0xFF800000> : vector<8xf32>
    %62 = vector.multi_reduction <maximumf>, %61, %cst_27 [1] : vector<8x8xf32> to vector<8xf32>
    %63 = vector.shape_cast %62 : vector<8xf32> to vector<8x1xf32>
    %64 = vector.broadcast %63 : vector<8x1xf32> to vector<8x8xf32>
    %65 = arith.subf %61, %64 : vector<8x8xf32>
    %66 = math.exp %65 : vector<8x8xf32>
    %cst_28 = arith.constant dense<0.000000e+00> : vector<8xf32>
    %67 = vector.multi_reduction <add>, %66, %cst_28 [1] : vector<8x8xf32> to vector<8xf32>
    %68 = vector.shape_cast %67 : vector<8xf32> to vector<8x1xf32>
    %69 = tpu.reciprocal %68 {approx = true} : vector<8x1xf32> -> vector<8x1xf32>
    %70 = vector.broadcast %69 : vector<8x1xf32> to vector<8x8xf32>
    %71 = arith.mulf %66, %70 : vector<8x8xf32>
    %72 = arith.truncf %71 : vector<8x8xf32> to vector<8x8xbf16>
    %cst_29 = arith.constant dense<0.000000e+00> : vector<8x8xf32>
    %73 = tpu.matmul %72, %60, %cst_29 {dimension_numbers = #tpu.dot_dimension_numbers<[1], [0], [0], [1], [0, 0, 1, 1], [], []>} : vector<8x8xbf16>, vector<8x8xbf16>, vector<8x8xf32> -> vector<8x8xf32>
    %74 = arith.truncf %73 : vector<8x8xf32> to vector<8x8xbf16>
    %75 = vector.extract_strided_slice %16 {offsets = [0, 16], sizes = [8, 8], strides = [1, 1]} : vector<8x32xbf16> to vector<8x8xbf16>
    %76 = vector.extract_strided_slice %28 {offsets = [0, 16], sizes = [8, 8], strides = [1, 1]} : vector<8x32xbf16> to vector<8x8xbf16>
    %77 = vector.extract_strided_slice %40 {offsets = [0, 16], sizes = [8, 8], strides = [1, 1]} : vector<8x32xbf16> to vector<8x8xbf16>
    %cst_30 = arith.constant dense<0.000000e+00> : vector<8x8xf32>
    %78 = tpu.matmul %75, %76, %cst_30 {dimension_numbers = #tpu.dot_dimension_numbers<[1], [1], [0], [0], [0, 0, 1, 0], [], []>} : vector<8x8xbf16>, vector<8x8xbf16>, vector<8x8xf32> -> vector<8x8xf32>
    %cst_31 = arith.constant dense<0xFF800000> : vector<8xf32>
    %79 = vector.multi_reduction <maximumf>, %78, %cst_31 [1] : vector<8x8xf32> to vector<8xf32>
    %80 = vector.shape_cast %79 : vector<8xf32> to vector<8x1xf32>
    %81 = vector.broadcast %80 : vector<8x1xf32> to vector<8x8xf32>
    %82 = arith.subf %78, %81 : vector<8x8xf32>
    %83 = math.exp %82 : vector<8x8xf32>
    %cst_32 = arith.constant dense<0.000000e+00> : vector<8xf32>
    %84 = vector.multi_reduction <add>, %83, %cst_32 [1] : vector<8x8xf32> to vector<8xf32>
    %85 = vector.shape_cast %84 : vector<8xf32> to vector<8x1xf32>
    %86 = tpu.reciprocal %85 {approx = true} : vector<8x1xf32> -> vector<8x1xf32>
    %87 = vector.broadcast %86 : vector<8x1xf32> to vector<8x8xf32>
    %88 = arith.mulf %83, %87 : vector<8x8xf32>
    %89 = arith.truncf %88 : vector<8x8xf32> to vector<8x8xbf16>
    %cst_33 = arith.constant dense<0.000000e+00> : vector<8x8xf32>
    %90 = tpu.matmul %89, %77, %cst_33 {dimension_numbers = #tpu.dot_dimension_numbers<[1], [0], [0], [1], [0, 0, 1, 1], [], []>} : vector<8x8xbf16>, vector<8x8xbf16>, vector<8x8xf32> -> vector<8x8xf32>
    %91 = arith.truncf %90 : vector<8x8xf32> to vector<8x8xbf16>
    %92 = vector.extract_strided_slice %16 {offsets = [0, 24], sizes = [8, 8], strides = [1, 1]} : vector<8x32xbf16> to vector<8x8xbf16>
    %93 = vector.extract_strided_slice %28 {offsets = [0, 24], sizes = [8, 8], strides = [1, 1]} : vector<8x32xbf16> to vector<8x8xbf16>
    %94 = vector.extract_strided_slice %40 {offsets = [0, 24], sizes = [8, 8], strides = [1, 1]} : vector<8x32xbf16> to vector<8x8xbf16>
    %cst_34 = arith.constant dense<0.000000e+00> : vector<8x8xf32>
    %95 = tpu.matmul %92, %93, %cst_34 {dimension_numbers = #tpu.dot_dimension_numbers<[1], [1], [0], [0], [0, 0, 1, 0], [], []>} : vector<8x8xbf16>, vector<8x8xbf16>, vector<8x8xf32> -> vector<8x8xf32>
    %cst_35 = arith.constant dense<0xFF800000> : vector<8xf32>
    %96 = vector.multi_reduction <maximumf>, %95, %cst_35 [1] : vector<8x8xf32> to vector<8xf32>
    %97 = vector.shape_cast %96 : vector<8xf32> to vector<8x1xf32>
    %98 = vector.broadcast %97 : vector<8x1xf32> to vector<8x8xf32>
    %99 = arith.subf %95, %98 : vector<8x8xf32>
    %100 = math.exp %99 : vector<8x8xf32>
    %cst_36 = arith.constant dense<0.000000e+00> : vector<8xf32>
    %101 = vector.multi_reduction <add>, %100, %cst_36 [1] : vector<8x8xf32> to vector<8xf32>
    %102 = vector.shape_cast %101 : vector<8xf32> to vector<8x1xf32>
    %103 = tpu.reciprocal %102 {approx = true} : vector<8x1xf32> -> vector<8x1xf32>
    %104 = vector.broadcast %103 : vector<8x1xf32> to vector<8x8xf32>
    %105 = arith.mulf %100, %104 : vector<8x8xf32>
    %106 = arith.truncf %105 : vector<8x8xf32> to vector<8x8xbf16>
    %cst_37 = arith.constant dense<0.000000e+00> : vector<8x8xf32>
    %107 = tpu.matmul %106, %94, %cst_37 {dimension_numbers = #tpu.dot_dimension_numbers<[1], [0], [0], [1], [0, 0, 1, 1], [], []>} : vector<8x8xbf16>, vector<8x8xbf16>, vector<8x8xf32> -> vector<8x8xf32>
    %108 = arith.truncf %107 : vector<8x8xf32> to vector<8x8xbf16>
    %109 = tpu.concatenate %57, %74, %91, %108 in 1 : vector<8x8xbf16>, vector<8x8xbf16>, vector<8x8xbf16>, vector<8x8xbf16> -> vector<8x32xbf16>
    %c0_38 = arith.constant 0 : index
    %c0_39 = arith.constant 0 : index
    %110 = vector.load %arg7[%c0_38, %c0_39] : memref<8x32xf32, #tpu.memory_space<vmem>>, vector<8x32xf32>
    %111 = arith.index_cast %c0_i32_5 : i32 to index
    %c0_40 = arith.constant 0 : index
    %c0_41 = arith.constant 0 : index
    %112 = vector.load %arg4[%111, %c0_40, %c0_41] : memref<1x32x32xbf16, #tpu.memory_space<vmem>>, vector<1x32x32xbf16>
    %113 = vector.shape_cast %112 : vector<1x32x32xbf16> to vector<32x32xbf16>
    %cst_42 = arith.constant dense<0.000000e+00> : vector<8x32xf32>
    %114 = tpu.matmul %109, %113, %cst_42 {dimension_numbers = #tpu.dot_dimension_numbers<[1], [0], [0], [1], [0, 0, 1, 1], [], []>} : vector<8x32xbf16>, vector<32x32xbf16>, vector<8x32xf32> -> vector<8x32xf32>
    %115 = arith.addf %110, %114 : vector<8x32xf32>
    %c0_43 = arith.constant 0 : index
    %c0_44 = arith.constant 0 : index
    %116 = vector.load %arg7[%c0_43, %c0_44] : memref<8x32xf32, #tpu.memory_space<vmem>>, vector<8x32xf32>
    tpu.vector_store %arg7[%c0_43, %c0_44], %115 {strides = array<i32>} : memref<8x32xf32, #tpu.memory_space<vmem>>, vector<8x32xf32>,
    %c1_i32_45 = arith.constant 1 : i32
    %c0_46 = arith.constant 0 : index
    %c0_47 = arith.constant 0 : index
    %117 = vector.load %arg7[%c0_46, %c0_47] : memref<8x32xf32, #tpu.memory_space<vmem>>, vector<8x32xf32>
    %118 = arith.index_cast %c0_i32 : i32 to index
    %c0_48 = arith.constant 0 : index
    %c0_49 = arith.constant 0 : index
    %119 = vector.load %arg6[%118, %c0_48, %c0_49] : memref<1x8x32xf32, #tpu.memory_space<vmem>>, vector<1x8x32xf32>
    %120 = vector.shape_cast %119 : vector<1x8x32xf32> to vector<8x32xf32>
    %121 = vector.shape_cast %117 : vector<8x32xf32> to vector<1x8x32xf32>
    tpu.vector_store %arg6[%118, %c0_48, %c0_49], %121 {strides = array<i32>} : memref<1x8x32xf32, #tpu.memory_space<vmem>>, vector<1x8x32xf32>,
    %c1_i32_50 = arith.constant 1 : i32
    return
  }
  func.func @transform_0(%arg0: i32) -> (i32, i32, i32) {
    %c0_i32 = arith.constant 0 : i32
    %c0_i32_0 = arith.constant 0 : i32
    %c0_i32_1 = arith.constant 0 : i32
    return %arg0, %c0_i32, %c0_i32_0 : i32, i32, i32
  }
  func.func @transform_1(%arg0: i32) -> (i32, i32, i32) {
    %c0_i32 = arith.constant 0 : i32
    %c0_i32_0 = arith.constant 0 : i32
    %c0_i32_1 = arith.constant 0 : i32
    %c0_i32_2 = arith.constant 0 : i32
    return %c0_i32, %c0_i32_0, %c0_i32_1 : i32, i32, i32
  }
  func.func @transform_2(%arg0: i32) -> (i32, i32, i32) {
    %c0_i32 = arith.constant 0 : i32
    %c0_i32_0 = arith.constant 0 : i32
    %c0_i32_1 = arith.constant 0 : i32
    %c0_i32_2 = arith.constant 0 : i32
    return %c0_i32, %c0_i32_0, %c0_i32_1 : i32, i32, i32
  }
  func.func @transform_3(%arg0: i32) -> (i32, i32, i32) {
    %c0_i32 = arith.constant 0 : i32
    %c0_i32_0 = arith.constant 0 : i32
    %c0_i32_1 = arith.constant 0 : i32
    %c0_i32_2 = arith.constant 0 : i32
    return %c0_i32, %c0_i32_0, %c0_i32_1 : i32, i32, i32
  }
  func.func @transform_4(%arg0: i32) -> (i32, i32) {
    %c0_i32 = arith.constant 0 : i32
    %c0_i32_0 = arith.constant 0 : i32
    %c0_i32_1 = arith.constant 0 : i32
    return %c0_i32, %c0_i32_0 : i32, i32
  }
  func.func @transform_5(%arg0: i32) -> (i32, i32, i32) {
    %c0_i32 = arith.constant 0 : i32
    %c0_i32_0 = arith.constant 0 : i32
    %c0_i32_1 = arith.constant 0 : i32
    return %arg0, %c0_i32, %c0_i32_0 : i32, i32, i32
  }
}

</mosaic_0001>

<llo_original>
// kernel: tpu_custom_call.1
$region0: #{tpu_custom_call.1}
  #allocation0 [shape = 'u32[]', space=smem, size = 0x4, offset = 0x4, fixed_abs, tag = 'smem constant byte address 0x4 - core index']
  #allocation1 [shape = 'u32[144,128]{1,0:T(1,128)}', space=vmem, size = 0x12000, scoped, tag = 'internal scratch']
  #allocation2 [shape = 'f32[8,32]{1,0:T(8,128)}', space=vmem, size = 0x1000, scoped, tag = 'scratch operand']
  %s0 = inlined_call_operand.hbm [shape: bf16[2,8,32], index: 0, kind: input, shape index: {}]
  %s1 = inlined_call_operand.hbm [shape: bf16[3,32,32], index: 1, kind: input, shape index: {}]
  %s2 = inlined_call_operand.vmem [shape: f32[3,1,32], index: 2, kind: input, shape index: {}]
  %s3 = inlined_call_operand.hbm [shape: bf16[1,32,32], index: 3, kind: input, shape index: {}]
  %s4 = inlined_call_operand.vmem [shape: f32[1,32], index: 4, kind: input, shape index: {}]
  %s5 = inlined_call_operand.hbm [shape: f32[2,8,32], index: 5, kind: output, shape index: {}]
  %s6 = sld [smem:[#allocation0]]
  $region65: #{tpu_custom_call.1} parent=0
    _
  %s8 = ssub.s32 1, %s6
  %s9 = scalar_select 0, %s8, %s6
  $region1: #{tpu_custom_call.1} parent=0
    #allocation3 [shape = 'u8[4096]{0}', space=vmem, size = 0x1000, scoped, tag = 'input window, operand 0']
    #allocation4 [shape = 's32[2]{0}', space=sflag, size = 0x8, scoped, tag = 'scoped memory for tpu_custom_call.1']
    #allocation5 [shape = 's32[2]{0}', space=sflag, size = 0x8, scoped, tag = 'scoped memory for tpu_custom_call.1']
    #allocation6 [shape = 'u8[24576]{0}', space=vmem, size = 0x6000, scoped, tag = 'input window, operand 1, single buffered']
    #allocation7 [shape = 's32[1]{0}', space=sflag, size = 0x4, scoped, tag = 'scoped memory for tpu_custom_call.1']
    #allocation8 [shape = 'u8[8192]{0}', space=vmem, size = 0x2000, scoped, tag = 'input window, operand 3, single buffered']
    #allocation9 [shape = 'u8[8192]{0}', space=vmem, size = 0x2000, scoped, tag = 'output window, operand 0']
    %10 = vsyncpa [#allocation4], 0
    %s11 = scalar_lea.sflag [#allocation4], 1
    %12 = vsyncpa %s11, 0
    %13 = vsyncpa [#allocation7], 0
    %14 = vsyncpa [#allocation5], 0
    %s15 = scalar_lea.sflag [#allocation5], 1
    %16 = vsyncpa %s15, 0
    loop: start=0, step=1, limit=4
    $region2: #{tpu_custom_call.1} parent=1 // loop_pre_header
      _
    $region3: #{tpu_custom_call.1} parent=1 // loop_header
      %s18 = sphi 0, %s22
      %p19 = scmp.ge.s32.totalorder %s18, 4
      %s28 = sphi 0, %s30
      %s31 = sphi 0, %s28
      %s32 = sphi 0, %s31
      %s48 = sphi 0, %s32
      %s52 = sphi 0, %s52
      %s54 = sphi 0, %s52
      %s55 = sphi 0, %s54
      %s69 = sphi 0, %s55
      %s73 = sphi 0, %s73
      %s75 = sphi 0, %s73
      %s76 = sphi 0, %s75
      %s90 = sphi 0, %s76
      %s94 = sphi 0, %s94
      %s96 = sphi 0, %s94
      %s97 = sphi 0, %s96
      %s111 = sphi 0, %s97
      %s115 = sphi 0, %s115
      %s117 = sphi 0, %s115
      %s118 = sphi 0, %s117
      %s132 = sphi 0, %s118
      %s138 = sphi 0, %s140
      %s141 = sphi 0, %s138
      %s142 = sphi 0, %s141
      %s158 = sphi 0, %s142
    $region4: #{tpu_custom_call.1} parent=1 // loop_header_branch
      %21 = sbr.rel (%p19) target = $region8
    $region5: #{tpu_custom_call.1} parent=1 // loop_body
      %s23 = ssub.s32 %s18, 1
      %s24 = ssub.s32 %s18, 2
      %s25 = sadd.s32 %s18, 1
      %s26 = ssub.s32 %s18, %s25
      %p27 = scmp.eq.s32.totalorder %s26, 0
      %s29 = sadd.s32 %s28, 1
      %s30 = scalar_select %p27, %s28, %s29
      %p33 = pneg %p27
      %p34 = scmp.eq.s32.totalorder %s18, 1
      %p35 = por %p33, %p34
      %p36 = scmp.ne.s32.totalorder %s28, %s31
      %p37 = scmp.eq.s32.totalorder %s18, 0
      %p38 = por %p36, %p37
      %p39 = scmp.ne.s32.totalorder %s28, %s31
      %p40 = scmp.eq.s32.totalorder %s23, 1
      %p41 = por %p39, %p40
      %p42 = scmp.ne.s32.totalorder %s31, %s32
      %p43 = scmp.eq.s32.totalorder %s23, 0
      %p44 = por %p42, %p43
      %p45 = scmp.ne.s32.totalorder %s31, %s32
      %p46 = scmp.eq.s32.totalorder %s24, 1
      %p47 = por %p45, %p46
      %p49 = scmp.ne.s32.totalorder %s32, %s48
      %p50 = scmp.eq.s32.totalorder %s24, 0
      %p51 = por %p49, %p50
      %s53 = sadd.s32 %s52, 1
      %p56 = scmp.eq.s32.totalorder %s18, 1
      %p57 = scmp.ne.s32.totalorder %s52, %s54
      %p58 = scmp.eq.s32.totalorder %s18, 0
      %p59 = por %p57, %p58
      %p60 = scmp.ne.s32.totalorder %s52, %s54
      %p61 = scmp.eq.s32.totalorder %s23, 1
      %p62 = por %p60, %p61
      %p63 = scmp.ne.s32.totalorder %s54, %s55
      %p64 = scmp.eq.s32.totalorder %s23, 0
      %p65 = por %p63, %p64
      %p66 = scmp.ne.s32.totalorder %s54, %s55
      %p67 = scmp.eq.s32.totalorder %s24, 1
      %p68 = por %p66, %p67
      %p70 = scmp.ne.s32.totalorder %s55, %s69
      %p71 = scmp.eq.s32.totalorder %s24, 0
      %p72 = por %p70, %p71
      %s74 = sadd.s32 %s73, 1
      %p77 = scmp.eq.s32.totalorder %s18, 1
      %p78 = scmp.ne.s32.totalorder %s73, %s75
      %p79 = scmp.eq.s32.totalorder %s18, 0
      %p80 = por %p78, %p79
      %p81 = scmp.ne.s32.totalorder %s73, %s75
      %p82 = scmp.eq.s32.totalorder %s23, 1
      %p83 = por %p81, %p82
      %p84 = scmp.ne.s32.totalorder %s75, %s76
      %p85 = scmp.eq.s32.totalorder %s23, 0
      %p86 = por %p84, %p85
      %p87 = scmp.ne.s32.totalorder %s75, %s76
      %p88 = scmp.eq.s32.totalorder %s24, 1
      %p89 = por %p87, %p88
      %p91 = scmp.ne.s32.totalorder %s76, %s90
      %p92 = scmp.eq.s32.totalorder %s24, 0
      %p93 = por %p91, %p92
      %s95 = sadd.s32 %s94, 1
      %p98 = scmp.eq.s32.totalorder %s18, 1
      %p99 = scmp.ne.s32.totalorder %s94, %s96
      %p100 = scmp.eq.s32.totalorder %s18, 0
      %p101 = por %p99, %p100
      %p102 = scmp.ne.s32.totalorder %s94, %s96
      %p103 = scmp.eq.s32.totalorder %s23, 1
      %p104 = por %p102, %p103
      %p105 = scmp.ne.s32.totalorder %s96, %s97
      %p106 = scmp.eq.s32.totalorder %s23, 0
      %p107 = por %p105, %p106
      %p108 = scmp.ne.s32.totalorder %s96, %s97
      %p109 = scmp.eq.s32.totalorder %s24, 1
      %p110 = por %p108, %p109
      %p112 = scmp.ne.s32.totalorder %s97, %s111
      %p113 = scmp.eq.s32.totalorder %s24, 0
      %p114 = por %p112, %p113
      %s116 = sadd.s32 %s115, 1
      %p119 = scmp.eq.s32.totalorder %s18, 1
      %p120 = scmp.ne.s32.totalorder %s115, %s117
      %p121 = scmp.eq.s32.totalorder %s18, 0
      %p122 = por %p120, %p121
      %p123 = scmp.ne.s32.totalorder %s115, %s117
      %p124 = scmp.eq.s32.totalorder %s23, 1
      %p125 = por %p123, %p124
      %p126 = scmp.ne.s32.totalorder %s117, %s118
      %p127 = scmp.eq.s32.totalorder %s23, 0
      %p128 = por %p126, %p127
      %p129 = scmp.ne.s32.totalorder %s117, %s118
      %p130 = scmp.eq.s32.totalorder %s24, 1
      %p131 = por %p129, %p130
      %p133 = scmp.ne.s32.totalorder %s118, %s132
      %p134 = scmp.eq.s32.totalorder %s24, 0
      %p135 = por %p133, %p134
      %s136 = ssub.s32 %s18, %s25
      %p137 = scmp.eq.s32.totalorder %s136, 0
      %s139 = sadd.s32 %s138, 1
      %s140 = scalar_select %p137, %s138, %s139
      %p143 = pneg %p137
      %p144 = scmp.eq.s32.totalorder %s18, 1
      %p145 = por %p143, %p144
      %p146 = scmp.ne.s32.totalorder %s138, %s141
      %p147 = scmp.eq.s32.totalorder %s18, 0
      %p148 = por %p146, %p147
      %p149 = scmp.ne.s32.totalorder %s138, %s141
      %p150 = scmp.eq.s32.totalorder %s23, 1
      %p151 = por %p149, %p150
      %p152 = scmp.ne.s32.totalorder %s141, %s142
      %p153 = scmp.eq.s32.totalorder %s23, 0
      %p154 = por %p152, %p153
      %p155 = scmp.ne.s32.totalorder %s141, %s142
      %p156 = scmp.eq.s32.totalorder %s24, 1
      %p157 = por %p155, %p156
      %p159 = scmp.ne.s32.totalorder %s142, %s158
      %p160 = scmp.eq.s32.totalorder %s24, 0
      %p161 = por %p159, %p160
      %p162 = scmp.le.s32.totalorder 1, %s18
      %p163 = scmp.lt.s32.totalorder %s18, 3
      %p164 = pnand %p162, %p163
      %p165 = pneg %p164
      // Predicated region
      $region9: #{tpu_custom_call.1} parent=5 // pred_check
        _
      $region10: #{tpu_custom_call.1} parent=5 // pred_check_branch
        %167 = sbr.rel (%p164) target = $region12
      $region11: #{tpu_custom_call.1} parent=5 // pred_region
        %s168 = ssub.s32 %s18, 1
        // Predicated region
        $region13: #{tpu_custom_call.1} parent=11 // pred_check
          %p169 = pneg %p65
        $region14: #{tpu_custom_call.1} parent=11 // pred_check_branch
          %171 = sbr.rel (%p169) target = $region16
        $region15: #{tpu_custom_call.1} parent=11 // pred_region
          %s173 = ssub.s32 768, 768
          %174 = vsyncadd [#allocation7], %s173
          %s175 = sshll.u32 [#allocation6], 4
          %s176 = int_to_ptr.vmem [resolvable:$true] %s175
          %181 = dma.hbm_to_vmem [thread:$0]  %s1, 768, %s176, [#allocation7], 64, 64, 4
        $region16: #{tpu_custom_call.1} parent=11 // pred_fallthru
          _
        // Predicated region
        $region17: #{tpu_custom_call.1} parent=11 // pred_check
          %p182 = pneg %p86
        $region18: #{tpu_custom_call.1} parent=11 // pred_check_branch
          %184 = sbr.rel (%p182) target = $region20
        $region19: #{tpu_custom_call.1} parent=11 // pred_region
          _
        $region20: #{tpu_custom_call.1} parent=11 // pred_fallthru
          _
        // Predicated region
        $region21: #{tpu_custom_call.1} parent=11 // pred_check
          %p185 = pneg %p107
        $region22: #{tpu_custom_call.1} parent=11 // pred_check_branch
          %187 = sbr.rel (%p185) target = $region24
        $region23: #{tpu_custom_call.1} parent=11 // pred_region
          %s189 = ssub.s32 256, 256
          %190 = vsyncadd [#allocation7], %s189
          %s191 = sshll.u32 [#allocation8], 4
          %s192 = int_to_ptr.vmem [resolvable:$true] %s191
          %197 = dma.hbm_to_vmem [thread:$0]  %s3, 256, %s192, [#allocation7], 64, 64, 4
        $region24: #{tpu_custom_call.1} parent=11 // pred_fallthru
          _
        // Predicated region
        $region25: #{tpu_custom_call.1} parent=11 // pred_check
          %p198 = pneg %p128
        $region26: #{tpu_custom_call.1} parent=11 // pred_check_branch
          %200 = sbr.rel (%p198) target = $region28
        $region27: #{tpu_custom_call.1} parent=11 // pred_region
          _
        $region28: #{tpu_custom_call.1} parent=11 // pred_fallthru
          _
      $region12: #{tpu_custom_call.1} parent=5 // pred_fallthru
        _
      %p201 = scmp.lt.s32.totalorder %s18, 2
      // Predicated region
      $region29: #{tpu_custom_call.1} parent=5 // pred_check
        %p202 = pneg %p201
      $region30: #{tpu_custom_call.1} parent=5 // pred_check_branch
        %204 = sbr.rel (%p202) target = $region32
      $region31: #{tpu_custom_call.1} parent=5 // pred_region
        // Predicated region
        $region33: #{tpu_custom_call.1} parent=31 // pred_check
          %p205 = pneg %p38
        $region34: #{tpu_custom_call.1} parent=31 // pred_check_branch
          %207 = sbr.rel (%p205) target = $region36
        $region35: #{tpu_custom_call.1} parent=31 // pred_region
          %s208 = sand.u32 %s28, 1
          %s209 = scalar_lea.sflag [#allocation4], %s208
          %s210 = sand.u32 %s28, 1
          %s211 = smul.addr %s210, 4
          %s212 = scalar_lea.vmem [#allocation3], %s211
          %s214 = ssub.s32 64, 64
          %215 = vsyncadd %s209, %s214
          %s216 = smul.addr %s18, 64
          %s217 = scalar_lea.hbm %s0, %s216
          %s219 = sshll.u32 %s212, 4
          %s220 = int_to_ptr.vmem [resolvable:$true] %s219
          %222 = dma.hbm_to_vmem [thread:$0]  %s217, 64, %s220, %s209
        $region36: #{tpu_custom_call.1} parent=31 // pred_fallthru
          _
      $region32: #{tpu_custom_call.1} parent=5 // pred_fallthru
        _
      %p223 = scmp.le.s32.totalorder 1, %s18
      %p224 = scmp.lt.s32.totalorder %s18, 3
      %p225 = pnand %p223, %p224
      %p226 = pneg %p225
      // Predicated region
      $region37: #{tpu_custom_call.1} parent=5 // pred_check
        _
      $region38: #{tpu_custom_call.1} parent=5 // pred_check_branch
        %228 = sbr.rel (%p225) target = $region40
      $region39: #{tpu_custom_call.1} parent=5 // pred_region
        %s229 = ssub.s32 %s18, 1
        %s230 = sand.u32 %s31, 1
        %s231 = scalar_lea.sflag [#allocation4], %s230
        %s232 = sand.u32 %s31, 1
        %s233 = smul.addr %s232, 4
        %s234 = scalar_lea.vmem [#allocation3], %s233
        // Predicated region
        $region41: #{tpu_custom_call.1} parent=39 // pred_check
          %p235 = pneg %p44
        $region42: #{tpu_custom_call.1} parent=39 // pred_check_branch
          %237 = sbr.rel (%p235) target = $region44
        $region43: #{tpu_custom_call.1} parent=39 // pred_region
          %238 = dma.done %s231, 64
        $region44: #{tpu_custom_call.1} parent=39 // pred_fallthru
          _
        // Predicated region
        $region45: #{tpu_custom_call.1} parent=39 // pred_check
          %p239 = pneg %p65
        $region46: #{tpu_custom_call.1} parent=39 // pred_check_branch
          %241 = sbr.rel (%p239) target = $region48
        $region47: #{tpu_custom_call.1} parent=39 // pred_region
          %242 = dma.done [#allocation7], 768
        $region48: #{tpu_custom_call.1} parent=39 // pred_fallthru
          _
        // Predicated region
        $region49: #{tpu_custom_call.1} parent=39 // pred_check
          %p243 = pneg %p107
        $region50: #{tpu_custom_call.1} parent=39 // pred_check_branch
          %245 = sbr.rel (%p243) target = $region52
        $region51: #{tpu_custom_call.1} parent=39 // pred_region
          %246 = dma.done [#allocation7], 256
        $region52: #{tpu_custom_call.1} parent=39 // pred_fallthru
          _
        %s247 = sand.u32 %s31, 1
        %s248 = scalar_lea.sflag [#allocation4], %s247
        %s249 = sand.u32 %s31, 1
        %s250 = smul.addr %s249, 4
        %s251 = scalar_lea.vmem [#allocation3], %s250
        %p252 = pneg %p44
        %p253 = pneg %p41
        %p254 = pneg %p65
        %p255 = pneg %p62
        %p256 = pneg %p86
        %p257 = pneg %p83
        %p258 = pneg %p107
        %p259 = pneg %p104
        %p260 = pneg %p128
        %p261 = pneg %p125
        %p262 = pneg %p154
        %p263 = pneg %p151
        %s264 = sand.u32 %s141, 1
        %s265 = scalar_lea.sflag [#allocation5], %s264
        %s266 = sand.u32 %s141, 1
        %s267 = smul.addr %s266, 8
        %s268 = scalar_lea.vmem [#allocation9], %s267
        %v270 = vld [vmem:[%s234] sm:$0xf]
        %v271 = vld [vmem:[%s4] sm:$0x1]
        %v273 = vlaneseq
        %v274 = vshrl.u32 %v273, 7
        %v275 = vsub.s32 0, %v274
        %v276 = vrot.slane %v271, %v275
        %vm278 = vcmask 261120
        %279 = vst.msk [vmem:[#allocation2] sm:$0xff] %vm278, %v276
        %v280 = vld [vmem:[#allocation6] sm:$0xf]
        %v281 = vld [vmem:[#allocation6 + $0x4] sm:$0xf]
        %v282 = vld [vmem:[#allocation6 + $0x8] sm:$0xf]
        %v283 = vld [vmem:[#allocation6 + $0xc] sm:$0xf]
        %v284 = vld [vmem:[%s2] sm:$0x1]
        %v286 = vlaneseq
        %v287 = vshrl.u32 %v286, 7
        %v288 = vsub.s32 0, %v287
        %v289 = vrot.slane %v284, %v288
        %v295 = vunpack.c.l.b16 %v280
        %v296 = vunpack.c.l.b16 %v281
        %v297 = vunpack.c.l.b16 %v282
        %v298 = vunpack.c.l.b16 %v283
        %v299 = vpack.c.b16 %v296, %v295
        %v300 = vpack.c.b16 %v298, %v297
        %v304 = vsel %vm278, %v270, 0
        %306 = vmatprep.subr.bf16.mxu0 0
        %307 = vmatpush1.bf16.msra.mxu0 %v299
        %308 = vmatprep.subr.bf16.mxu0 0
        %309 = vmatpush1.bf16.msra.mxu0 %v300
        %310 = vmatprep.subr.bf16.mxu0 0
        %311 = vmatpush1.bf16.msra.mxu0 0
        %312 = vmatprep.subr.bf16.mxu0 0
        %313 = vmatpush1.bf16.msra.mxu0 0
        %314 = vmatprep.subr.bf16.mxu0 0
        %315 = vmatpush1.bf16.msra.mxu0 0
        %316 = vmatprep.subr.bf16.mxu0 0
        %317 = vmatpush1.bf16.msra.mxu0 0
        %318 = vmatprep.subr.bf16.mxu0 0
        %319 = vmatpush1.bf16.msra.mxu0 0
        %320 = vmatprep.subr.bf16.mxu0 0
        %321 = vmatpush1.bf16.msra.mxu0 0
        %322 = vmatprep.subr.bf16.mxu0 0
        %323 = vmatpush1.bf16.msra.mxu0 0
        %324 = vmatprep.subr.bf16.mxu0 0
        %325 = vmatpush1.bf16.msra.mxu0 0
        %326 = vmatprep.subr.bf16.mxu0 0
        %327 = vmatpush1.bf16.msra.mxu0 0
        %328 = vmatprep.subr.bf16.mxu0 0
        %329 = vmatpush1.bf16.msra.mxu0 0
        %330 = vmatprep.subr.bf16.mxu0 0
        %331 = vmatpush1.bf16.msra.mxu0 0
        %332 = vmatprep.subr.bf16.mxu0 0
        %333 = vmatpush1.bf16.msra.mxu0 0
        %334 = vmatprep.subr.bf16.mxu0 0
        %335 = vmatpush1.bf16.msra.mxu0 0
        %336 = vmatprep.subr.bf16.mxu0 0
        %337 = vmatpush1.bf16.msra.mxu0 0
        %338 = vmatprep.mubr.bf16.mxu0 0
        %339 = vmatmul.mubr.bf16.gmra.mrb[0].mxu0 %v304
        %v340 = vpop.f32.mrb[0].mxu0
        %v341 = vadd.f32 %v289, %v340
        %v342 = vpop.f32.mrb[0].mxu0
        %v343 = vpop.f32.mrb[0].mxu0
        %v344 = vpop.f32.mrb[0].mxu0
        %345 = vdwg.mxu0
        %v346 = vpack.c.bf16 %v341, %v341
        %s347 = scalar_lea.vmem [#allocation6], 16
        %v348 = vld [vmem:[%s347] sm:$0xf]
        %v349 = vld [vmem:[%s347 + $0x4] sm:$0xf]
        %v350 = vld [vmem:[%s347 + $0x8] sm:$0xf]
        %v351 = vld [vmem:[%s347 + $0xc] sm:$0xf]
        %s352 = scalar_lea.vmem %s2, 1
        %v353 = vld [vmem:[%s352] sm:$0x1]
        %v355 = vlaneseq
        %v356 = vshrl.u32 %v355, 7
        %v357 = vsub.s32 0, %v356
        %v358 = vrot.slane %v353, %v357
        %v364 = vunpack.c.l.b16 %v348
        %v365 = vunpack.c.l.b16 %v349
        %v366 = vunpack.c.l.b16 %v350
        %v367 = vunpack.c.l.b16 %v351
        %v368 = vpack.c.b16 %v365, %v364
        %v369 = vpack.c.b16 %v367, %v366
        %372 = vmatprep.subr.bf16.mxu0 0
        %373 = vmatpush1.bf16.msra.mxu0 %v368
        %374 = vmatprep.subr.bf16.mxu0 0
        %375 = vmatpush1.bf16.msra.mxu0 %v369
        %376 = vmatprep.subr.bf16.mxu0 0
        %377 = vmatpush1.bf16.msra.mxu0 0
        %378 = vmatprep.subr.bf16.mxu0 0
        %379 = vmatpush1.bf16.msra.mxu0 0
        %380 = vmatprep.subr.bf16.mxu0 0
        %381 = vmatpush1.bf16.msra.mxu0 0
        %382 = vmatprep.subr.bf16.mxu0 0
        %383 = vmatpush1.bf16.msra.mxu0 0
        %384 = vmatprep.subr.bf16.mxu0 0
        %385 = vmatpush1.bf16.msra.mxu0 0
        %386 = vmatprep.subr.bf16.mxu0 0
        %387 = vmatpush1.bf16.msra.mxu0 0
        %388 = vmatprep.subr.bf16.mxu0 0
        %389 = vmatpush1.bf16.msra.mxu0 0
        %390 = vmatprep.subr.bf16.mxu0 0
        %391 = vmatpush1.bf16.msra.mxu0 0
        %392 = vmatprep.subr.bf16.mxu0 0
        %393 = vmatpush1.bf16.msra.mxu0 0
        %394 = vmatprep.subr.bf16.mxu0 0
        %395 = vmatpush1.bf16.msra.mxu0 0
        %396 = vmatprep.subr.bf16.mxu0 0
        %397 = vmatpush1.bf16.msra.mxu0 0
        %398 = vmatprep.subr.bf16.mxu0 0
        %399 = vmatpush1.bf16.msra.mxu0 0
        %400 = vmatprep.subr.bf16.mxu0 0
        %401 = vmatpush1.bf16.msra.mxu0 0
        %402 = vmatprep.subr.bf16.mxu0 0
        %403 = vmatpush1.bf16.msra.mxu0 0
        %404 = vmatprep.mubr.bf16.mxu0 0
        %405 = vmatmul.mubr.bf16.gmra.mrb[0].mxu0 %v304
        %v406 = vpop.f32.mrb[0].mxu0
        %v407 = vadd.f32 %v358, %v406
        %v408 = vpop.f32.mrb[0].mxu0
        %v409 = vpop.f32.mrb[0].mxu0
        %v410 = vpop.f32.mrb[0].mxu0
        %411 = vdwg.mxu0
        %v412 = vpack.c.bf16 %v407, %v407
        %s413 = scalar_lea.vmem [#allocation6], 32
        %v414 = vld [vmem:[%s413] sm:$0xf]
        %v415 = vld [vmem:[%s413 + $0x4] sm:$0xf]
        %v416 = vld [vmem:[%s413 + $0x8] sm:$0xf]
        %v417 = vld [vmem:[%s413 + $0xc] sm:$0xf]
        %s418 = scalar_lea.vmem %s2, 2
        %v419 = vld [vmem:[%s418] sm:$0x1]
        %v421 = vlaneseq
        %v422 = vshrl.u32 %v421, 7
        %v423 = vsub.s32 0, %v422
        %v424 = vrot.slane %v419, %v423
        %v430 = vunpack.c.l.b16 %v414
        %v431 = vunpack.c.l.b16 %v415
        %v432 = vunpack.c.l.b16 %v416
        %v433 = vunpack.c.l.b16 %v417
        %v434 = vpack.c.b16 %v431, %v430
        %v435 = vpack.c.b16 %v433, %v432
        %438 = vmatprep.subr.bf16.mxu0 0
        %439 = vmatpush1.bf16.msra.mxu0 %v434
        %440 = vmatprep.subr.bf16.mxu0 0
        %441 = vmatpush1.bf16.msra.mxu0 %v435
        %442 = vmatprep.subr.bf16.mxu0 0
        %443 = vmatpush1.bf16.msra.mxu0 0
        %444 = vmatprep.subr.bf16.mxu0 0
        %445 = vmatpush1.bf16.msra.mxu0 0
        %446 = vmatprep.subr.bf16.mxu0 0
        %447 = vmatpush1.bf16.msra.mxu0 0
        %448 = vmatprep.subr.bf16.mxu0 0
        %449 = vmatpush1.bf16.msra.mxu0 0
        %450 = vmatprep.subr.bf16.mxu0 0
        %451 = vmatpush1.bf16.msra.mxu0 0
        %452 = vmatprep.subr.bf16.mxu0 0
        %453 = vmatpush1.bf16.msra.mxu0 0
        %454 = vmatprep.subr.bf16.mxu0 0
        %455 = vmatpush1.bf16.msra.mxu0 0
        %456 = vmatprep.subr.bf16.mxu0 0
        %457 = vmatpush1.bf16.msra.mxu0 0
        %458 = vmatprep.subr.bf16.mxu0 0
        %459 = vmatpush1.bf16.msra.mxu0 0
        %460 = vmatprep.subr.bf16.mxu0 0
        %461 = vmatpush1.bf16.msra.mxu0 0
        %462 = vmatprep.subr.bf16.mxu0 0
        %463 = vmatpush1.bf16.msra.mxu0 0
        %464 = vmatprep.subr.bf16.mxu0 0
        %465 = vmatpush1.bf16.msra.mxu0 0
        %466 = vmatprep.subr.bf16.mxu0 0
        %467 = vmatpush1.bf16.msra.mxu0 0
        %468 = vmatprep.subr.bf16.mxu0 0
        %469 = vmatpush1.bf16.msra.mxu0 0
        %470 = vmatprep.mubr.bf16.mxu0 0
        %471 = vmatmul.mubr.bf16.gmra.mrb[0].mxu0 %v304
        %v472 = vpop.f32.mrb[0].mxu0
        %v473 = vadd.f32 %v424, %v472
        %v474 = vpop.f32.mrb[0].mxu0
        %v475 = vpop.f32.mrb[0].mxu0
        %v476 = vpop.f32.mrb[0].mxu0
        %477 = vdwg.mxu0
        %v478 = vpack.c.bf16 %v473, %v473
        %vm479 = vcmask 64512
        %v481 = vsel %vm479, %v346, 0
        %v484 = vsel %vm479, %v412, 0
        %486 = vmatprep.subr.bf16.mxu0 0
        %487 = vmatpush1.bf16.xpose.msra.mxu0 %v484
        %488 = vmatprep.subr.bf16.mxu0 0
        %489 = vmatpush1.bf16.xpose.msra.mxu0 0
        %490 = vmatprep.subr.bf16.mxu0 0
        %491 = vmatpush1.bf16.xpose.msra.mxu0 0
        %492 = vmatprep.subr.bf16.mxu0 0
        %493 = vmatpush1.bf16.xpose.msra.mxu0 0
        %494 = vmatprep.subr.bf16.mxu0 0
        %495 = vmatpush1.bf16.xpose.msra.mxu0 0
        %496 = vmatprep.subr.bf16.mxu0 0
        %497 = vmatpush1.bf16.xpose.msra.mxu0 0
        %498 = vmatprep.subr.bf16.mxu0 0
        %499 = vmatpush1.bf16.xpose.msra.mxu0 0
        %500 = vmatprep.subr.bf16.mxu0 0
        %501 = vmatpush1.bf16.xpose.msra.mxu0 0
        %502 = vmatprep.subr.bf16.mxu0 0
        %503 = vmatpush1.bf16.xpose.msra.mxu0 0
        %504 = vmatprep.subr.bf16.mxu0 0
        %505 = vmatpush1.bf16.xpose.msra.mxu0 0
        %506 = vmatprep.subr.bf16.mxu0 0
        %507 = vmatpush1.bf16.xpose.msra.mxu0 0
        %508 = vmatprep.subr.bf16.mxu0 0
        %509 = vmatpush1.bf16.xpose.msra.mxu0 0
        %510 = vmatprep.subr.bf16.mxu0 0
        %511 = vmatpush1.bf16.xpose.msra.mxu0 0
        %512 = vmatprep.subr.bf16.mxu0 0
        %513 = vmatpush1.bf16.xpose.msra.mxu0 0
        %514 = vmatprep.subr.bf16.mxu0 0
        %515 = vmatpush1.bf16.xpose.msra.mxu0 0
        %516 = vmatprep.subr.bf16.mxu0 0
        %517 = vmatpush1.bf16.xpose.msra.mxu0 0
        %518 = vmatprep.mubr.bf16.mxu0 0
        %519 = vmatmul.mubr.bf16.gmra.mrb[0].mxu0 %v481
        %v520 = vpop.f32.mrb[0].mxu0
        %v521 = vadd.f32 0.0, %v520
        %v522 = vpop.f32.mrb[0].mxu0
        %v523 = vpop.f32.mrb[0].mxu0
        %v524 = vpop.f32.mrb[0].mxu0
        %525 = vdwg.mxu0
        %v526 = vsel %vm479, %v521, -inf
        %527 = vmax.xlane.f32.xlu0 %v526
        %v528 = vpop.xlane.xlu0 %527
        %v529 = vsub.f32 %v521, %v528
        %v530 = vmul.f32 %v529, 1.442695
        %v531 = vpow.pop %v530
        %v532 = vsel %vm479, %v531, 0.0
        %533 = vadd.xlane.f32.xlu0 %v532
        %v534 = vpop.xlane.xlu0 %533
        %v535 = vrcp.pop %v534
        %v536 = vmul.f32 %v531, %v535
        %v537 = vpack.c.bf16 %v536, %v536
        %v539 = vsel %vm479, %v537, 0
        %vm541 = vcmask 1043456
        %v543 = vsel %vm541, %v478, 0
        %545 = vmatprep.subr.bf16.mxu0 0
        %546 = vmatpush1.bf16.msra.mxu0 %v543
        %547 = vmatprep.subr.bf16.mxu0 0
        %548 = vmatpush1.bf16.msra.mxu0 0
        %549 = vmatprep.subr.bf16.mxu0 0
        %550 = vmatpush1.bf16.msra.mxu0 0
        %551 = vmatprep.subr.bf16.mxu0 0
        %552 = vmatpush1.bf16.msra.mxu0 0
        %553 = vmatprep.subr.bf16.mxu0 0
        %554 = vmatpush1.bf16.msra.mxu0 0
        %555 = vmatprep.subr.bf16.mxu0 0
        %556 = vmatpush1.bf16.msra.mxu0 0
        %557 = vmatprep.subr.bf16.mxu0 0
        %558 = vmatpush1.bf16.msra.mxu0 0
        %559 = vmatprep.subr.bf16.mxu0 0
        %560 = vmatpush1.bf16.msra.mxu0 0
        %561 = vmatprep.subr.bf16.mxu0 0
        %562 = vmatpush1.bf16.msra.mxu0 0
        %563 = vmatprep.subr.bf16.mxu0 0
        %564 = vmatpush1.bf16.msra.mxu0 0
        %565 = vmatprep.subr.bf16.mxu0 0
        %566 = vmatpush1.bf16.msra.mxu0 0
        %567 = vmatprep.subr.bf16.mxu0 0
        %568 = vmatpush1.bf16.msra.mxu0 0
        %569 = vmatprep.subr.bf16.mxu0 0
        %570 = vmatpush1.bf16.msra.mxu0 0
        %571 = vmatprep.subr.bf16.mxu0 0
        %572 = vmatpush1.bf16.msra.mxu0 0
        %573 = vmatprep.subr.bf16.mxu0 0
        %574 = vmatpush1.bf16.msra.mxu0 0
        %575 = vmatprep.subr.bf16.mxu0 0
        %576 = vmatpush1.bf16.msra.mxu0 0
        %577 = vmatprep.mubr.bf16.mxu0 0
        %578 = vmatmul.mubr.bf16.gmra.mrb[0].mxu0 %v539
        %v579 = vpop.f32.mrb[0].mxu0
        %v580 = vadd.f32 0.0, %v579
        %v581 = vpop.f32.mrb[0].mxu0
        %v582 = vpop.f32.mrb[0].mxu0
        %v583 = vpop.f32.mrb[0].mxu0
        %584 = vdwg.mxu0
        %v585 = vpack.c.bf16 %v580, %v580
        %587 = vrot.lane.b32.xlu0 %v346, 120
        %v588 = vpop.permute.xlu0 %587
        %590 = vrot.lane.b32.xlu0 %v412, 120
        %v591 = vpop.permute.xlu0 %590
        %v593 = vsel %vm479, %v588, 0
        %v596 = vsel %vm479, %v591, 0
        %598 = vmatprep.subr.bf16.mxu0 0
        %599 = vmatpush1.bf16.xpose.msra.mxu0 %v596
        %600 = vmatprep.subr.bf16.mxu0 0
        %601 = vmatpush1.bf16.xpose.msra.mxu0 0
        %602 = vmatprep.subr.bf16.mxu0 0
        %603 = vmatpush1.bf16.xpose.msra.mxu0 0
        %604 = vmatprep.subr.bf16.mxu0 0
        %605 = vmatpush1.bf16.xpose.msra.mxu0 0
        %606 = vmatprep.subr.bf16.mxu0 0
        %607 = vmatpush1.bf16.xpose.msra.mxu0 0
        %608 = vmatprep.subr.bf16.mxu0 0
        %609 = vmatpush1.bf16.xpose.msra.mxu0 0
        %610 = vmatprep.subr.bf16.mxu0 0
        %611 = vmatpush1.bf16.xpose.msra.mxu0 0
        %612 = vmatprep.subr.bf16.mxu0 0
        %613 = vmatpush1.bf16.xpose.msra.mxu0 0
        %614 = vmatprep.subr.bf16.mxu0 0
        %615 = vmatpush1.bf16.xpose.msra.mxu0 0
        %616 = vmatprep.subr.bf16.mxu0 0
        %617 = vmatpush1.bf16.xpose.msra.mxu0 0
        %618 = vmatprep.subr.bf16.mxu0 0
        %619 = vmatpush1.bf16.xpose.msra.mxu0 0
        %620 = vmatprep.subr.bf16.mxu0 0
        %621 = vmatpush1.bf16.xpose.msra.mxu0 0
        %622 = vmatprep.subr.bf16.mxu0 0
        %623 = vmatpush1.bf16.xpose.msra.mxu0 0
        %624 = vmatprep.subr.bf16.mxu0 0
        %625 = vmatpush1.bf16.xpose.msra.mxu0 0
        %626 = vmatprep.subr.bf16.mxu0 0
        %627 = vmatpush1.bf16.xpose.msra.mxu0 0
        %628 = vmatprep.subr.bf16.mxu0 0
        %629 = vmatpush1.bf16.xpose.msra.mxu0 0
        %630 = vmatprep.mubr.bf16.mxu0 0
        %631 = vmatmul.mubr.bf16.gmra.mrb[0].mxu0 %v593
        %v632 = vpop.f32.mrb[0].mxu0
        %v633 = vadd.f32 0.0, %v632
        %v634 = vpop.f32.mrb[0].mxu0
        %v635 = vpop.f32.mrb[0].mxu0
        %v636 = vpop.f32.mrb[0].mxu0
        %637 = vdwg.mxu0
        %v638 = vsel %vm479, %v633, -inf
        %639 = vmax.xlane.f32.xlu0 %v638
        %v640 = vpop.xlane.xlu0 %639
        %v641 = vsub.f32 %v633, %v640
        %v642 = vmul.f32 %v641, 1.442695
        %v643 = vpow.pop %v642
        %v644 = vsel %vm479, %v643, 0.0
        %645 = vadd.xlane.f32.xlu0 %v644
        %v646 = vpop.xlane.xlu0 %645
        %v647 = vrcp.pop %v646
        %v648 = vmul.f32 %v643, %v647
        %v649 = vpack.c.bf16 %v648, %v648
        %651 = vrot.lane.b32.xlu0 %v478, 120
        %v652 = vpop.permute.xlu0 %651
        %v654 = vsel %vm479, %v649, 0
        %v657 = vsel %vm541, %v652, 0
        %659 = vmatprep.subr.bf16.mxu0 0
        %660 = vmatpush1.bf16.msra.mxu0 %v657
        %661 = vmatprep.subr.bf16.mxu0 0
        %662 = vmatpush1.bf16.msra.mxu0 0
        %663 = vmatprep.subr.bf16.mxu0 0
        %664 = vmatpush1.bf16.msra.mxu0 0
        %665 = vmatprep.subr.bf16.mxu0 0
        %666 = vmatpush1.bf16.msra.mxu0 0
        %667 = vmatprep.subr.bf16.mxu0 0
        %668 = vmatpush1.bf16.msra.mxu0 0
        %669 = vmatprep.subr.bf16.mxu0 0
        %670 = vmatpush1.bf16.msra.mxu0 0
        %671 = vmatprep.subr.bf16.mxu0 0
        %672 = vmatpush1.bf16.msra.mxu0 0
        %673 = vmatprep.subr.bf16.mxu0 0
        %674 = vmatpush1.bf16.msra.mxu0 0
        %675 = vmatprep.subr.bf16.mxu0 0
        %676 = vmatpush1.bf16.msra.mxu0 0
        %677 = vmatprep.subr.bf16.mxu0 0
        %678 = vmatpush1.bf16.msra.mxu0 0
        %679 = vmatprep.subr.bf16.mxu0 0
        %680 = vmatpush1.bf16.msra.mxu0 0
        %681 = vmatprep.subr.bf16.mxu0 0
        %682 = vmatpush1.bf16.msra.mxu0 0
        %683 = vmatprep.subr.bf16.mxu0 0
        %684 = vmatpush1.bf16.msra.mxu0 0
        %685 = vmatprep.subr.bf16.mxu0 0
        %686 = vmatpush1.bf16.msra.mxu0 0
        %687 = vmatprep.subr.bf16.mxu0 0
        %688 = vmatpush1.bf16.msra.mxu0 0
        %689 = vmatprep.subr.bf16.mxu0 0
        %690 = vmatpush1.bf16.msra.mxu0 0
        %691 = vmatprep.mubr.bf16.mxu0 0
        %692 = vmatmul.mubr.bf16.gmra.mrb[0].mxu0 %v654
        %v693 = vpop.f32.mrb[0].mxu0
        %v694 = vadd.f32 0.0, %v693
        %v695 = vpop.f32.mrb[0].mxu0
        %v696 = vpop.f32.mrb[0].mxu0
        %v697 = vpop.f32.mrb[0].mxu0
        %698 = vdwg.mxu0
        %v699 = vpack.c.bf16 %v694, %v694
        %700 = vrot.lane.b32.xlu0 %v346, 112
        %v701 = vpop.permute.xlu0 %700
        %702 = vrot.lane.b32.xlu0 %v412, 112
        %v703 = vpop.permute.xlu0 %702
        %v705 = vsel %vm479, %v701, 0
        %v708 = vsel %vm479, %v703, 0
        %710 = vmatprep.subr.bf16.mxu0 0
        %711 = vmatpush1.bf16.xpose.msra.mxu0 %v708
        %712 = vmatprep.subr.bf16.mxu0 0
        %713 = vmatpush1.bf16.xpose.msra.mxu0 0
        %714 = vmatprep.subr.bf16.mxu0 0
        %715 = vmatpush1.bf16.xpose.msra.mxu0 0
        %716 = vmatprep.subr.bf16.mxu0 0
        %717 = vmatpush1.bf16.xpose.msra.mxu0 0
        %718 = vmatprep.subr.bf16.mxu0 0
        %719 = vmatpush1.bf16.xpose.msra.mxu0 0
        %720 = vmatprep.subr.bf16.mxu0 0
        %721 = vmatpush1.bf16.xpose.msra.mxu0 0
        %722 = vmatprep.subr.bf16.mxu0 0
        %723 = vmatpush1.bf16.xpose.msra.mxu0 0
        %724 = vmatprep.subr.bf16.mxu0 0
        %725 = vmatpush1.bf16.xpose.msra.mxu0 0
        %726 = vmatprep.subr.bf16.mxu0 0
        %727 = vmatpush1.bf16.xpose.msra.mxu0 0
        %728 = vmatprep.subr.bf16.mxu0 0
        %729 = vmatpush1.bf16.xpose.msra.mxu0 0
        %730 = vmatprep.subr.bf16.mxu0 0
        %731 = vmatpush1.bf16.xpose.msra.mxu0 0
        %732 = vmatprep.subr.bf16.mxu0 0
        %733 = vmatpush1.bf16.xpose.msra.mxu0 0
        %734 = vmatprep.subr.bf16.mxu0 0
        %735 = vmatpush1.bf16.xpose.msra.mxu0 0
        %736 = vmatprep.subr.bf16.mxu0 0
        %737 = vmatpush1.bf16.xpose.msra.mxu0 0
        %738 = vmatprep.subr.bf16.mxu0 0
        %739 = vmatpush1.bf16.xpose.msra.mxu0 0
        %740 = vmatprep.subr.bf16.mxu0 0
        %741 = vmatpush1.bf16.xpose.msra.mxu0 0
        %742 = vmatprep.mubr.bf16.mxu0 0
        %743 = vmatmul.mubr.bf16.gmra.mrb[0].mxu0 %v705
        %v744 = vpop.f32.mrb[0].mxu0
        %v745 = vadd.f32 0.0, %v744
        %v746 = vpop.f32.mrb[0].mxu0
        %v747 = vpop.f32.mrb[0].mxu0
        %v748 = vpop.f32.mrb[0].mxu0
        %749 = vdwg.mxu0
        %v750 = vsel %vm479, %v745, -inf
        %751 = vmax.xlane.f32.xlu0 %v750
        %v752 = vpop.xlane.xlu0 %751
        %v753 = vsub.f32 %v745, %v752
        %v754 = vmul.f32 %v753, 1.442695
        %v755 = vpow.pop %v754
        %v756 = vsel %vm479, %v755, 0.0
        %757 = vadd.xlane.f32.xlu0 %v756
        %v758 = vpop.xlane.xlu0 %757
        %v759 = vrcp.pop %v758
        %v760 = vmul.f32 %v755, %v759
        %v761 = vpack.c.bf16 %v760, %v760
        %762 = vrot.lane.b32.xlu0 %v478, 112
        %v763 = vpop.permute.xlu0 %762
        %v765 = vsel %vm479, %v761, 0
        %v768 = vsel %vm541, %v763, 0
        %770 = vmatprep.subr.bf16.mxu0 0
        %771 = vmatpush1.bf16.msra.mxu0 %v768
        %772 = vmatprep.subr.bf16.mxu0 0
        %773 = vmatpush1.bf16.msra.mxu0 0
        %774 = vmatprep.subr.bf16.mxu0 0
        %775 = vmatpush1.bf16.msra.mxu0 0
        %776 = vmatprep.subr.bf16.mxu0 0
        %777 = vmatpush1.bf16.msra.mxu0 0
        %778 = vmatprep.subr.bf16.mxu0 0
        %779 = vmatpush1.bf16.msra.mxu0 0
        %780 = vmatprep.subr.bf16.mxu0 0
        %781 = vmatpush1.bf16.msra.mxu0 0
        %782 = vmatprep.subr.bf16.mxu0 0
        %783 = vmatpush1.bf16.msra.mxu0 0
        %784 = vmatprep.subr.bf16.mxu0 0
        %785 = vmatpush1.bf16.msra.mxu0 0
        %786 = vmatprep.subr.bf16.mxu0 0
        %787 = vmatpush1.bf16.msra.mxu0 0
        %788 = vmatprep.subr.bf16.mxu0 0
        %789 = vmatpush1.bf16.msra.mxu0 0
        %790 = vmatprep.subr.bf16.mxu0 0
        %791 = vmatpush1.bf16.msra.mxu0 0
        %792 = vmatprep.subr.bf16.mxu0 0
        %793 = vmatpush1.bf16.msra.mxu0 0
        %794 = vmatprep.subr.bf16.mxu0 0
        %795 = vmatpush1.bf16.msra.mxu0 0
        %796 = vmatprep.subr.bf16.mxu0 0
        %797 = vmatpush1.bf16.msra.mxu0 0
        %798 = vmatprep.subr.bf16.mxu0 0
        %799 = vmatpush1.bf16.msra.mxu0 0
        %800 = vmatprep.subr.bf16.mxu0 0
        %801 = vmatpush1.bf16.msra.mxu0 0
        %802 = vmatprep.mubr.bf16.mxu0 0
        %803 = vmatmul.mubr.bf16.gmra.mrb[0].mxu0 %v765
        %v804 = vpop.f32.mrb[0].mxu0
        %v805 = vadd.f32 0.0, %v804
        %v806 = vpop.f32.mrb[0].mxu0
        %v807 = vpop.f32.mrb[0].mxu0
        %v808 = vpop.f32.mrb[0].mxu0
        %809 = vdwg.mxu0
        %v810 = vpack.c.bf16 %v805, %v805
        %811 = vrot.lane.b32.xlu0 %v346, 104
        %v812 = vpop.permute.xlu0 %811
        %813 = vrot.lane.b32.xlu0 %v412, 104
        %v814 = vpop.permute.xlu0 %813
        %v816 = vsel %vm479, %v812, 0
        %v819 = vsel %vm479, %v814, 0
        %821 = vmatprep.subr.bf16.mxu0 0
        %822 = vmatpush1.bf16.xpose.msra.mxu0 %v819
        %823 = vmatprep.subr.bf16.mxu0 0
        %824 = vmatpush1.bf16.xpose.msra.mxu0 0
        %825 = vmatprep.subr.bf16.mxu0 0
        %826 = vmatpush1.bf16.xpose.msra.mxu0 0
        %827 = vmatprep.subr.bf16.mxu0 0
        %828 = vmatpush1.bf16.xpose.msra.mxu0 0
        %829 = vmatprep.subr.bf16.mxu0 0
        %830 = vmatpush1.bf16.xpose.msra.mxu0 0
        %831 = vmatprep.subr.bf16.mxu0 0
        %832 = vmatpush1.bf16.xpose.msra.mxu0 0
        %833 = vmatprep.subr.bf16.mxu0 0
        %834 = vmatpush1.bf16.xpose.msra.mxu0 0
        %835 = vmatprep.subr.bf16.mxu0 0
        %836 = vmatpush1.bf16.xpose.msra.mxu0 0
        %837 = vmatprep.subr.bf16.mxu0 0
        %838 = vmatpush1.bf16.xpose.msra.mxu0 0
        %839 = vmatprep.subr.bf16.mxu0 0
        %840 = vmatpush1.bf16.xpose.msra.mxu0 0
        %841 = vmatprep.subr.bf16.mxu0 0
        %842 = vmatpush1.bf16.xpose.msra.mxu0 0
        %843 = vmatprep.subr.bf16.mxu0 0
        %844 = vmatpush1.bf16.xpose.msra.mxu0 0
        %845 = vmatprep.subr.bf16.mxu0 0
        %846 = vmatpush1.bf16.xpose.msra.mxu0 0
        %847 = vmatprep.subr.bf16.mxu0 0
        %848 = vmatpush1.bf16.xpose.msra.mxu0 0
        %849 = vmatprep.subr.bf16.mxu0 0
        %850 = vmatpush1.bf16.xpose.msra.mxu0 0
        %851 = vmatprep.subr.bf16.mxu0 0
        %852 = vmatpush1.bf16.xpose.msra.mxu0 0
        %853 = vmatprep.mubr.bf16.mxu0 0
        %854 = vmatmul.mubr.bf16.gmra.mrb[0].mxu0 %v816
        %v855 = vpop.f32.mrb[0].mxu0
        %v856 = vadd.f32 0.0, %v855
        %v857 = vpop.f32.mrb[0].mxu0
        %v858 = vpop.f32.mrb[0].mxu0
        %v859 = vpop.f32.mrb[0].mxu0
        %860 = vdwg.mxu0
        %v861 = vsel %vm479, %v856, -inf
        %862 = vmax.xlane.f32.xlu0 %v861
        %v863 = vpop.xlane.xlu0 %862
        %v864 = vsub.f32 %v856, %v863
        %v865 = vmul.f32 %v864, 1.442695
        %v866 = vpow.pop %v865
        %v867 = vsel %vm479, %v866, 0.0
        %868 = vadd.xlane.f32.xlu0 %v867
        %v869 = vpop.xlane.xlu0 %868
        %v870 = vrcp.pop %v869
        %v871 = vmul.f32 %v866, %v870
        %v872 = vpack.c.bf16 %v871, %v871
        %873 = vrot.lane.b32.xlu0 %v478, 104
        %v874 = vpop.permute.xlu0 %873
        %v876 = vsel %vm479, %v872, 0
        %v879 = vsel %vm541, %v874, 0
        %881 = vmatprep.subr.bf16.mxu0 0
        %882 = vmatpush1.bf16.msra.mxu0 %v879
        %883 = vmatprep.subr.bf16.mxu0 0
        %884 = vmatpush1.bf16.msra.mxu0 0
        %885 = vmatprep.subr.bf16.mxu0 0
        %886 = vmatpush1.bf16.msra.mxu0 0
        %887 = vmatprep.subr.bf16.mxu0 0
        %888 = vmatpush1.bf16.msra.mxu0 0
        %889 = vmatprep.subr.bf16.mxu0 0
        %890 = vmatpush1.bf16.msra.mxu0 0
        %891 = vmatprep.subr.bf16.mxu0 0
        %892 = vmatpush1.bf16.msra.mxu0 0
        %893 = vmatprep.subr.bf16.mxu0 0
        %894 = vmatpush1.bf16.msra.mxu0 0
        %895 = vmatprep.subr.bf16.mxu0 0
        %896 = vmatpush1.bf16.msra.mxu0 0
        %897 = vmatprep.subr.bf16.mxu0 0
        %898 = vmatpush1.bf16.msra.mxu0 0
        %899 = vmatprep.subr.bf16.mxu0 0
        %900 = vmatpush1.bf16.msra.mxu0 0
        %901 = vmatprep.subr.bf16.mxu0 0
        %902 = vmatpush1.bf16.msra.mxu0 0
        %903 = vmatprep.subr.bf16.mxu0 0
        %904 = vmatpush1.bf16.msra.mxu0 0
        %905 = vmatprep.subr.bf16.mxu0 0
        %906 = vmatpush1.bf16.msra.mxu0 0
        %907 = vmatprep.subr.bf16.mxu0 0
        %908 = vmatpush1.bf16.msra.mxu0 0
        %909 = vmatprep.subr.bf16.mxu0 0
        %910 = vmatpush1.bf16.msra.mxu0 0
        %911 = vmatprep.subr.bf16.mxu0 0
        %912 = vmatpush1.bf16.msra.mxu0 0
        %913 = vmatprep.mubr.bf16.mxu0 0
        %914 = vmatmul.mubr.bf16.gmra.mrb[0].mxu0 %v876
        %v915 = vpop.f32.mrb[0].mxu0
        %v916 = vadd.f32 0.0, %v915
        %v917 = vpop.f32.mrb[0].mxu0
        %v918 = vpop.f32.mrb[0].mxu0
        %v919 = vpop.f32.mrb[0].mxu0
        %920 = vdwg.mxu0
        %v921 = vpack.c.bf16 %v916, %v916
        %923 = vrot.lane.b32.xlu0 %v699, 8
        %v924 = vpop.permute.xlu0 %923
        %926 = vrot.lane.b32.xlu0 %v810, 16
        %v927 = vpop.permute.xlu0 %926
        %929 = vrot.lane.b32.xlu0 %v921, 24
        %v930 = vpop.permute.xlu0 %929
        %v933 = vsel %vm479, %v585, %v924
        %vm934 = vcmask 130048
        %v936 = vsel %vm934, %v933, %v927
        %vm937 = vcmask 195584
        %v939 = vsel %vm937, %v936, %v930
        %v940 = vld [vmem:[#allocation2] sm:$0xff]
        %v941 = vld [vmem:[#allocation8] sm:$0xf]
        %v942 = vld [vmem:[#allocation8 + $0x4] sm:$0xf]
        %v943 = vld [vmem:[#allocation8 + $0x8] sm:$0xf]
        %v944 = vld [vmem:[#allocation8 + $0xc] sm:$0xf]
        %v949 = vunpack.c.l.b16 %v941
        %v950 = vunpack.c.l.b16 %v942
        %v951 = vunpack.c.l.b16 %v943
        %v952 = vunpack.c.l.b16 %v944
        %v953 = vpack.c.b16 %v950, %v949
        %v954 = vpack.c.b16 %v952, %v951
        %v957 = vsel %vm278, %v939, 0
        %959 = vmatprep.subr.bf16.mxu0 0
        %960 = vmatpush1.bf16.msra.mxu0 %v953
        %961 = vmatprep.subr.bf16.mxu0 0
        %962 = vmatpush1.bf16.msra.mxu0 %v954
        %963 = vmatprep.subr.bf16.mxu0 0
        %964 = vmatpush1.bf16.msra.mxu0 0
        %965 = vmatprep.subr.bf16.mxu0 0
        %966 = vmatpush1.bf16.msra.mxu0 0
        %967 = vmatprep.subr.bf16.mxu0 0
        %968 = vmatpush1.bf16.msra.mxu0 0
        %969 = vmatprep.subr.bf16.mxu0 0
        %970 = vmatpush1.bf16.msra.mxu0 0
        %971 = vmatprep.subr.bf16.mxu0 0
        %972 = vmatpush1.bf16.msra.mxu0 0
        %973 = vmatprep.subr.bf16.mxu0 0
        %974 = vmatpush1.bf16.msra.mxu0 0
        %975 = vmatprep.subr.bf16.mxu0 0
        %976 = vmatpush1.bf16.msra.mxu0 0
        %977 = vmatprep.subr.bf16.mxu0 0
        %978 = vmatpush1.bf16.msra.mxu0 0
        %979 = vmatprep.subr.bf16.mxu0 0
        %980 = vmatpush1.bf16.msra.mxu0 0
        %981 = vmatprep.subr.bf16.mxu0 0
        %982 = vmatpush1.bf16.msra.mxu0 0
        %983 = vmatprep.subr.bf16.mxu0 0
        %984 = vmatpush1.bf16.msra.mxu0 0
        %985 = vmatprep.subr.bf16.mxu0 0
        %986 = vmatpush1.bf16.msra.mxu0 0
        %987 = vmatprep.subr.bf16.mxu0 0
        %988 = vmatpush1.bf16.msra.mxu0 0
        %989 = vmatprep.subr.bf16.mxu0 0
        %990 = vmatpush1.bf16.msra.mxu0 0
        %991 = vmatprep.mubr.bf16.mxu0 0
        %992 = vmatmul.mubr.bf16.gmra.mrb[0].mxu0 %v957
        %v993 = vpop.f32.mrb[0].mxu0
        %v994 = vadd.f32 0.0, %v993
        %v995 = vpop.f32.mrb[0].mxu0
        %v996 = vpop.f32.mrb[0].mxu0
        %v997 = vpop.f32.mrb[0].mxu0
        %998 = vdwg.mxu0
        %v999 = vadd.f32 %v940, %v994
        %1000 = vst.msk [vmem:[#allocation2] sm:$0xff] %vm278, %v999
        %v1001 = vld [vmem:[#allocation2] sm:$0xff]
        %1002 = vst.msk [vmem:[%s268] sm:$0xff] %vm278, %v1001
        %s1003 = sand.u32 %s141, 1
        %s1004 = scalar_lea.sflag [#allocation5], %s1003
        %s1005 = sand.u32 %s141, 1
        %s1006 = smul.addr %s1005, 8
        %s1007 = scalar_lea.vmem [#allocation9], %s1006
        // Predicated region
        $region53: #{tpu_custom_call.1} parent=39 // pred_check
          %p1008 = pneg %p151
        $region54: #{tpu_custom_call.1} parent=39 // pred_check_branch
          %1010 = sbr.rel (%p1008) target = $region56
        $region55: #{tpu_custom_call.1} parent=39 // pred_region
          %s1012 = ssub.s32 128, 128
          %1013 = vsyncadd %s1004, %s1012
          %s1014 = smul.addr %s23, 128
          %s1015 = scalar_lea.hbm %s5, %s1014
          %s1017 = sshll.u32 %s1007, 4
          %s1018 = int_to_ptr.vmem [resolvable:$true] %s1017
          %1020 = dma.vmem_to_hbm [thread:$0]  %s1018, 128, %s1015, %s1004
        $region56: #{tpu_custom_call.1} parent=39 // pred_fallthru
          _
      $region40: #{tpu_custom_call.1} parent=5 // pred_fallthru
        _
      %p1021 = scmp.le.s32.totalorder 2, %s18
      // Predicated region
      $region57: #{tpu_custom_call.1} parent=5 // pred_check
        %p1022 = pneg %p1021
      $region58: #{tpu_custom_call.1} parent=5 // pred_check_branch
        %1024 = sbr.rel (%p1022) target = $region60
      $region59: #{tpu_custom_call.1} parent=5 // pred_region
        %s1025 = ssub.s32 %s18, 2
        // Predicated region
        $region61: #{tpu_custom_call.1} parent=59 // pred_check
          %p1026 = pneg %p157
        $region62: #{tpu_custom_call.1} parent=59 // pred_check_branch
          %1028 = sbr.rel (%p1026) target = $region64
        $region63: #{tpu_custom_call.1} parent=59 // pred_region
          %s1029 = sand.u32 %s142, 1
          %s1030 = scalar_lea.sflag [#allocation5], %s1029
          %s1031 = sand.u32 %s142, 1
          %s1032 = smul.addr %s1031, 8
          %s1033 = scalar_lea.vmem [#allocation9], %s1032
          %1034 = dma.done %s1030, 128
        $region64: #{tpu_custom_call.1} parent=59 // pred_fallthru
          _
      $region60: #{tpu_custom_call.1} parent=5 // pred_fallthru
        _
    $region6: #{tpu_custom_call.1} parent=1 // loop_footer
      %s22 = sadd.s32 1, %s18
    $region7: #{tpu_custom_call.1} parent=1 // loop_footer_branch
      %17 = sbr.rel target = $region3
    $region8: #{tpu_custom_call.1} parent=1 // loop_exit
      _
    %1035 = vsyncpa [#allocation4], 1
    %s1036 = scalar_lea.sflag [#allocation4], 1
    %1037 = vsyncpa %s1036, 1
    %1038 = vsyncpa [#allocation7], 1
    %1039 = vsyncpa [#allocation5], 1
    %s1040 = scalar_lea.sflag [#allocation5], 1
    %1041 = vsyncpa %s1040, 1

// kernel: tpu_custom_call.1
$region0: #{tpu_custom_call.1}
  #allocation0 [shape = 'u32[]', space=smem, size = 0x4, offset = 0x4, fixed_abs, tag = 'smem constant byte address 0x4 - core index']
  #allocation1 [shape = 'u32[144,128]{1,0:T(1,128)}', space=vmem, size = 0x12000, scoped, tag = 'internal scratch']
  #allocation2 [shape = 'f32[8,32]{1,0:T(8,128)}', space=vmem, size = 0x1000, scoped, tag = 'scratch operand']
  %s0 = inlined_call_operand.hbm [shape: bf16[2,8,32], index: 0, kind: input, shape index: {}]
  %s1 = inlined_call_operand.hbm [shape: bf16[3,32,32], index: 1, kind: input, shape index: {}]
  %s2 = inlined_call_operand.vmem [shape: f32[3,1,32], index: 2, kind: input, shape index: {}]
  %s3 = inlined_call_operand.hbm [shape: bf16[1,32,32], index: 3, kind: input, shape index: {}]
  %s4 = inlined_call_operand.vmem [shape: f32[1,32], index: 4, kind: input, shape index: {}]
  %s5 = inlined_call_operand.hbm [shape: f32[2,8,32], index: 5, kind: output, shape index: {}]
  %s6 = sld [smem:[#allocation0]]
  $region65: #{tpu_custom_call.1} parent=0
    _
  %s8 = ssub.s32 1, %s6
  %s9 = scalar_select 0, %s8, %s6
  $region1: #{tpu_custom_call.1} parent=0
    #allocation3 [shape = 'u8[4096]{0}', space=vmem, size = 0x1000, scoped, tag = 'input window, operand 0']
    #allocation4 [shape = 's32[2]{0}', space=sflag, size = 0x8, scoped, tag = 'scoped memory for tpu_custom_call.1']
    #allocation5 [shape = 's32[2]{0}', space=sflag, size = 0x8, scoped, tag = 'scoped memory for tpu_custom_call.1']
    #allocation6 [shape = 'u8[24576]{0}', space=vmem, size = 0x6000, scoped, tag = 'input window, operand 1, single buffered']
    #allocation7 [shape = 's32[1]{0}', space=sflag, size = 0x4, scoped, tag = 'scoped memory for tpu_custom_call.1']
    #allocation8 [shape = 'u8[8192]{0}', space=vmem, size = 0x2000, scoped, tag = 'input window, operand 3, single buffered']
    #allocation9 [shape = 'u8[8192]{0}', space=vmem, size = 0x2000, scoped, tag = 'output window, operand 0']
    %10 = vsyncpa [#allocation4], 0
    %s11 = scalar_lea.sflag [#allocation4], 1
    %12 = vsyncpa %s11, 0
    %13 = vsyncpa [#allocation7], 0
    %14 = vsyncpa [#allocation5], 0
    %s15 = scalar_lea.sflag [#allocation5], 1
    %16 = vsyncpa %s15, 0
    loop: start=0, step=1, limit=4
    $region2: #{tpu_custom_call.1} parent=1 // loop_pre_header
      _
    $region3: #{tpu_custom_call.1} parent=1 // loop_header
      %s18 = sphi 0, %s22
      %p19 = scmp.ge.s32.totalorder %s18, 4
      %s28 = sphi 0, %s30
      %s31 = sphi 0, %s28
      %s32 = sphi 0, %s31
      %s48 = sphi 0, %s32
      %s52 = sphi 0, %s52
      %s54 = sphi 0, %s52
      %s55 = sphi 0, %s54
      %s69 = sphi 0, %s55
      %s73 = sphi 0, %s73
      %s75 = sphi 0, %s73
      %s76 = sphi 0, %s75
      %s90 = sphi 0, %s76
      %s94 = sphi 0, %s94
      %s96 = sphi 0, %s94
      %s97 = sphi 0, %s96
      %s111 = sphi 0, %s97
      %s115 = sphi 0, %s115
      %s117 = sphi 0, %s115
      %s118 = sphi 0, %s117
      %s132 = sphi 0, %s118
      %s138 = sphi 0, %s140
      %s141 = sphi 0, %s138
      %s142 = sphi 0, %s141
      %s158 = sphi 0, %s142
    $region4: #{tpu_custom_call.1} parent=1 // loop_header_branch
      %21 = sbr.rel (%p19) target = $region8
    $region5: #{tpu_custom_call.1} parent=1 // loop_body
      %s23 = ssub.s32 %s18, 1
      %s24 = ssub.s32 %s18, 2
      %s25 = sadd.s32 %s18, 1
      %s26 = ssub.s32 %s18, %s25
      %p27 = scmp.eq.s32.totalorder %s26, 0
      %s29 = sadd.s32 %s28, 1
      %s30 = scalar_select %p27, %s28, %s29
      %p33 = pneg %p27
      %p34 = scmp.eq.s32.totalorder %s18, 1
      %p35 = por %p33, %p34
      %p36 = scmp.ne.s32.totalorder %s28, %s31
      %p37 = scmp.eq.s32.totalorder %s18, 0
      %p38 = por %p36, %p37
      %p39 = scmp.ne.s32.totalorder %s28, %s31
      %p40 = scmp.eq.s32.totalorder %s23, 1
      %p41 = por %p39, %p40
      %p42 = scmp.ne.s32.totalorder %s31, %s32
      %p43 = scmp.eq.s32.totalorder %s23, 0
      %p44 = por %p42, %p43
      %p45 = scmp.ne.s32.totalorder %s31, %s32
      %p46 = scmp.eq.s32.totalorder %s24, 1
      %p47 = por %p45, %p46
      %p49 = scmp.ne.s32.totalorder %s32, %s48
      %p50 = scmp.eq.s32.totalorder %s24, 0
      %p51 = por %p49, %p50
      %s53 = sadd.s32 %s52, 1
      %p56 = scmp.eq.s32.totalorder %s18, 1
      %p57 = scmp.ne.s32.totalorder %s52, %s54
      %p58 = scmp.eq.s32.totalorder %s18, 0
      %p59 = por %p57, %p58
      %p60 = scmp.ne.s32.totalorder %s52, %s54
      %p61 = scmp.eq.s32.totalorder %s23, 1
      %p62 = por %p60, %p61
      %p63 = scmp.ne.s32.totalorder %s54, %s55
      %p64 = scmp.eq.s32.totalorder %s23, 0
      %p65 = por %p63, %p64
      %p66 = scmp.ne.s32.totalorder %s54, %s55
      %p67 = scmp.eq.s32.totalorder %s24, 1
      %p68 = por %p66, %p67
      %p70 = scmp.ne.s32.totalorder %s55, %s69
      %p71 = scmp.eq.s32.totalorder %s24, 0
      %p72 = por %p70, %p71
      %s74 = sadd.s32 %s73, 1
      %p77 = scmp.eq.s32.totalorder %s18, 1
      %p78 = scmp.ne.s32.totalorder %s73, %s75
      %p79 = scmp.eq.s32.totalorder %s18, 0
      %p80 = por %p78, %p79
      %p81 = scmp.ne.s32.totalorder %s73, %s75
      %p82 = scmp.eq.s32.totalorder %s23, 1
      %p83 = por %p81, %p82
      %p84 = scmp.ne.s32.totalorder %s75, %s76
      %p85 = scmp.eq.s32.totalorder %s23, 0
      %p86 = por %p84, %p85
      %p87 = scmp.ne.s32.totalorder %s75, %s76
      %p88 = scmp.eq.s32.totalorder %s24, 1
      %p89 = por %p87, %p88
      %p91 = scmp.ne.s32.totalorder %s76, %s90
      %p92 = scmp.eq.s32.totalorder %s24, 0
      %p93 = por %p91, %p92
      %s95 = sadd.s32 %s94, 1
      %p98 = scmp.eq.s32.totalorder %s18, 1
      %p99 = scmp.ne.s32.totalorder %s94, %s96
      %p100 = scmp.eq.s32.totalorder %s18, 0
      %p101 = por %p99, %p100
      %p102 = scmp.ne.s32.totalorder %s94, %s96
      %p103 = scmp.eq.s32.totalorder %s23, 1
      %p104 = por %p102, %p103
      %p105 = scmp.ne.s32.totalorder %s96, %s97
      %p106 = scmp.eq.s32.totalorder %s23, 0
      %p107 = por %p105, %p106
      %p108 = scmp.ne.s32.totalorder %s96, %s97
      %p109 = scmp.eq.s32.totalorder %s24, 1
      %p110 = por %p108, %p109
      %p112 = scmp.ne.s32.totalorder %s97, %s111
      %p113 = scmp.eq.s32.totalorder %s24, 0
      %p114 = por %p112, %p113
      %s116 = sadd.s32 %s115, 1
      %p119 = scmp.eq.s32.totalorder %s18, 1
      %p120 = scmp.ne.s32.totalorder %s115, %s117
      %p121 = scmp.eq.s32.totalorder %s18, 0
      %p122 = por %p120, %p121
      %p123 = scmp.ne.s32.totalorder %s115, %s117
      %p124 = scmp.eq.s32.totalorder %s23, 1
      %p125 = por %p123, %p124
      %p126 = scmp.ne.s32.totalorder %s117, %s118
      %p127 = scmp.eq.s32.totalorder %s23, 0
      %p128 = por %p126, %p127
      %p129 = scmp.ne.s32.totalorder %s117, %s118
      %p130 = scmp.eq.s32.totalorder %s24, 1
      %p131 = por %p129, %p130
      %p133 = scmp.ne.s32.totalorder %s118, %s132
      %p134 = scmp.eq.s32.totalorder %s24, 0
      %p135 = por %p133, %p134
      %s136 = ssub.s32 %s18, %s25
      %p137 = scmp.eq.s32.totalorder %s136, 0
      %s139 = sadd.s32 %s138, 1
      %s140 = scalar_select %p137, %s138, %s139
      %p143 = pneg %p137
      %p144 = scmp.eq.s32.totalorder %s18, 1
      %p145 = por %p143, %p144
      %p146 = scmp.ne.s32.totalorder %s138, %s141
      %p147 = scmp.eq.s32.totalorder %s18, 0
      %p148 = por %p146, %p147
      %p149 = scmp.ne.s32.totalorder %s138, %s141
      %p150 = scmp.eq.s32.totalorder %s23, 1
      %p151 = por %p149, %p150
      %p152 = scmp.ne.s32.totalorder %s141, %s142
      %p153 = scmp.eq.s32.totalorder %s23, 0
      %p154 = por %p152, %p153
      %p155 = scmp.ne.s32.totalorder %s141, %s142
      %p156 = scmp.eq.s32.totalorder %s24, 1
      %p157 = por %p155, %p156
      %p159 = scmp.ne.s32.totalorder %s142, %s158
      %p160 = scmp.eq.s32.totalorder %s24, 0
      %p161 = por %p159, %p160
      %p162 = scmp.le.s32.totalorder 1, %s18
      %p163 = scmp.lt.s32.totalorder %s18, 3
      %p164 = pnand %p162, %p163
      %p165 = pneg %p164
      // Predicated region
      $region9: #{tpu_custom_call.1} parent=5 // pred_check
        _
      $region10: #{tpu_custom_call.1} parent=5 // pred_check_branch
        %167 = sbr.rel (%p164) target = $region12
      $region11: #{tpu_custom_call.1} parent=5 // pred_region
        %s168 = ssub.s32 %s18, 1
        // Predicated region
        $region13: #{tpu_custom_call.1} parent=11 // pred_check
          %p169 = pneg %p65
        $region14: #{tpu_custom_call.1} parent=11 // pred_check_branch
          %171 = sbr.rel (%p169) target = $region16
        $region15: #{tpu_custom_call.1} parent=11 // pred_region
          %s173 = ssub.s32 768, 768
          %174 = vsyncadd [#allocation7], %s173
          %s175 = sshll.u32 [#allocation6], 4
          %s176 = int_to_ptr.vmem [resolvable:$true] %s175
          %181 = dma.hbm_to_vmem [thread:$0]  %s1, 768, %s176, [#allocation7], 64, 64, 4
        $region16: #{tpu_custom_call.1} parent=11 // pred_fallthru
          _
        // Predicated region
        $region17: #{tpu_custom_call.1} parent=11 // pred_check
          %p182 = pneg %p86
        $region18: #{tpu_custom_call.1} parent=11 // pred_check_branch
          %184 = sbr.rel (%p182) target = $region20
        $region19: #{tpu_custom_call.1} parent=11 // pred_region
          _
        $region20: #{tpu_custom_call.1} parent=11 // pred_fallthru
          _
        // Predicated region
        $region21: #{tpu_custom_call.1} parent=11 // pred_check
          %p185 = pneg %p107
        $region22: #{tpu_custom_call.1} parent=11 // pred_check_branch
          %187 = sbr.rel (%p185) target = $region24
        $region23: #{tpu_custom_call.1} parent=11 // pred_region
          %s189 = ssub.s32 256, 256
          %190 = vsyncadd [#allocation7], %s189
          %s191 = sshll.u32 [#allocation8], 4
          %s192 = int_to_ptr.vmem [resolvable:$true] %s191
          %197 = dma.hbm_to_vmem [thread:$0]  %s3, 256, %s192, [#allocation7], 64, 64, 4
        $region24: #{tpu_custom_call.1} parent=11 // pred_fallthru
          _
        // Predicated region
        $region25: #{tpu_custom_call.1} parent=11 // pred_check
          %p198 = pneg %p128
        $region26: #{tpu_custom_call.1} parent=11 // pred_check_branch
          %200 = sbr.rel (%p198) target = $region28
        $region27: #{tpu_custom_call.1} parent=11 // pred_region
          _
        $region28: #{tpu_custom_call.1} parent=11 // pred_fallthru
          _
      $region12: #{tpu_custom_call.1} parent=5 // pred_fallthru
        _
      %p201 = scmp.lt.s32.totalorder %s18, 2
      // Predicated region
      $region29: #{tpu_custom_call.1} parent=5 // pred_check
        %p202 = pneg %p201
      $region30: #{tpu_custom_call.1} parent=5 // pred_check_branch
        %204 = sbr.rel (%p202) target = $region32
      $region31: #{tpu_custom_call.1} parent=5 // pred_region
        // Predicated region
        $region33: #{tpu_custom_call.1} parent=31 // pred_check
          %p205 = pneg %p38
        $region34: #{tpu_custom_call.1} parent=31 // pred_check_branch
          %207 = sbr.rel (%p205) target = $region36
        $region35: #{tpu_custom_call.1} parent=31 // pred_region
          %s208 = sand.u32 %s28, 1
          %s209 = scalar_lea.sflag [#allocation4], %s208
          %s210 = sand.u32 %s28, 1
          %s211 = smul.addr %s210, 4
          %s212 = scalar_lea.vmem [#allocation3], %s211
          %s214 = ssub.s32 64, 64
          %215 = vsyncadd %s209, %s214
          %s216 = smul.addr %s18, 64
          %s217 = scalar_lea.hbm %s0, %s216
          %s219 = sshll.u32 %s212, 4
          %s220 = int_to_ptr.vmem [resolvable:$true] %s219
          %222 = dma.hbm_to_vmem [thread:$0]  %s217, 64, %s220, %s209
        $region36: #{tpu_custom_call.1} parent=31 // pred_fallthru
          _
      $region32: #{tpu_custom_call.1} parent=5 // pred_fallthru
        _
      %p223 = scmp.le.s32.totalorder 1, %s18
      %p224 = scmp.lt.s32.totalorder %s18, 3
      %p225 = pnand %p223, %p224
      %p226 = pneg %p225
      // Predicated region
      $region37: #{tpu_custom_call.1} parent=5 // pred_check
        _
      $region38: #{tpu_custom_call.1} parent=5 // pred_check_branch
        %228 = sbr.rel (%p225) target = $region40
      $region39: #{tpu_custom_call.1} parent=5 // pred_region
        %s229 = ssub.s32 %s18, 1
        %s230 = sand.u32 %s31, 1
        %s231 = scalar_lea.sflag [#allocation4], %s230
        %s232 = sand.u32 %s31, 1
        %s233 = smul.addr %s232, 4
        %s234 = scalar_lea.vmem [#allocation3], %s233
        // Predicated region
        $region41: #{tpu_custom_call.1} parent=39 // pred_check
          %p235 = pneg %p44
        $region42: #{tpu_custom_call.1} parent=39 // pred_check_branch
          %237 = sbr.rel (%p235) target = $region44
        $region43: #{tpu_custom_call.1} parent=39 // pred_region
          %238 = dma.done %s231, 64
        $region44: #{tpu_custom_call.1} parent=39 // pred_fallthru
          _
        // Predicated region
        $region45: #{tpu_custom_call.1} parent=39 // pred_check
          %p239 = pneg %p65
        $region46: #{tpu_custom_call.1} parent=39 // pred_check_branch
          %241 = sbr.rel (%p239) target = $region48
        $region47: #{tpu_custom_call.1} parent=39 // pred_region
          %242 = dma.done [#allocation7], 768
        $region48: #{tpu_custom_call.1} parent=39 // pred_fallthru
          _
        // Predicated region
        $region49: #{tpu_custom_call.1} parent=39 // pred_check
          %p243 = pneg %p107
        $region50: #{tpu_custom_call.1} parent=39 // pred_check_branch
          %245 = sbr.rel (%p243) target = $region52
        $region51: #{tpu_custom_call.1} parent=39 // pred_region
          %246 = dma.done [#allocation7], 256
        $region52: #{tpu_custom_call.1} parent=39 // pred_fallthru
          _
        %s247 = sand.u32 %s31, 1
        %s248 = scalar_lea.sflag [#allocation4], %s247
        %s249 = sand.u32 %s31, 1
        %s250 = smul.addr %s249, 4
        %s251 = scalar_lea.vmem [#allocation3], %s250
        %p252 = pneg %p44
        %p253 = pneg %p41
        %p254 = pneg %p65
        %p255 = pneg %p62
        %p256 = pneg %p86
        %p257 = pneg %p83
        %p258 = pneg %p107
        %p259 = pneg %p104
        %p260 = pneg %p128
        %p261 = pneg %p125
        %p262 = pneg %p154
        %p263 = pneg %p151
        %s264 = sand.u32 %s141, 1
        %s265 = scalar_lea.sflag [#allocation5], %s264
        %s266 = sand.u32 %s141, 1
        %s267 = smul.addr %s266, 8
        %s268 = scalar_lea.vmem [#allocation9], %s267
        %v270 = vld [vmem:[%s234] sm:$0xf]
        %v271 = vld [vmem:[%s4] sm:$0x1]
        %v273 = vlaneseq
        %v274 = vshrl.u32 %v273, 7
        %v275 = vsub.s32 0, %v274
        %v276 = vrot.slane %v271, %v275
        %vm278 = vcmask 261120
        %279 = vst.msk [vmem:[#allocation2] sm:$0xff] %vm278, %v276
        %v280 = vld [vmem:[#allocation6] sm:$0xf]
        %v281 = vld [vmem:[#allocation6 + $0x4] sm:$0xf]
        %v282 = vld [vmem:[#allocation6 + $0x8] sm:$0xf]
        %v283 = vld [vmem:[#allocation6 + $0xc] sm:$0xf]
        %v284 = vld [vmem:[%s2] sm:$0x1]
        %v286 = vlaneseq
        %v287 = vshrl.u32 %v286, 7
        %v288 = vsub.s32 0, %v287
        %v289 = vrot.slane %v284, %v288
        %v295 = vunpack.c.l.b16 %v280
        %v296 = vunpack.c.l.b16 %v281
        %v297 = vunpack.c.l.b16 %v282
        %v298 = vunpack.c.l.b16 %v283
        %v299 = vpack.c.b16 %v296, %v295
        %v300 = vpack.c.b16 %v298, %v297
        %v304 = vsel %vm278, %v270, 0
        %306 = vmatprep.subr.bf16.mxu0 0
        %307 = vmatpush1.bf16.msra.mxu0 %v299
        %308 = vmatprep.subr.bf16.mxu0 0
        %309 = vmatpush1.bf16.msra.mxu0 %v300
        %310 = vmatprep.subr.bf16.mxu0 0
        %311 = vmatpush1.bf16.msra.mxu0 0
        %312 = vmatprep.subr.bf16.mxu0 0
        %313 = vmatpush1.bf16.msra.mxu0 0
        %314 = vmatprep.subr.bf16.mxu0 0
        %315 = vmatpush1.bf16.msra.mxu0 0
        %316 = vmatprep.subr.bf16.mxu0 0
        %317 = vmatpush1.bf16.msra.mxu0 0
        %318 = vmatprep.subr.bf16.mxu0 0
        %319 = vmatpush1.bf16.msra.mxu0 0
        %320 = vmatprep.subr.bf16.mxu0 0
        %321 = vmatpush1.bf16.msra.mxu0 0
        %322 = vmatprep.subr.bf16.mxu0 0
        %323 = vmatpush1.bf16.msra.mxu0 0
        %324 = vmatprep.subr.bf16.mxu0 0
        %325 = vmatpush1.bf16.msra.mxu0 0
        %326 = vmatprep.subr.bf16.mxu0 0
        %327 = vmatpush1.bf16.msra.mxu0 0
        %328 = vmatprep.subr.bf16.mxu0 0
        %329 = vmatpush1.bf16.msra.mxu0 0
        %330 = vmatprep.subr.bf16.mxu0 0
        %331 = vmatpush1.bf16.msra.mxu0 0
        %332 = vmatprep.subr.bf16.mxu0 0
        %333 = vmatpush1.bf16.msra.mxu0 0
        %334 = vmatprep.subr.bf16.mxu0 0
        %335 = vmatpush1.bf16.msra.mxu0 0
        %336 = vmatprep.subr.bf16.mxu0 0
        %337 = vmatpush1.bf16.msra.mxu0 0
        %338 = vmatprep.mubr.bf16.mxu0 0
        %339 = vmatmul.mubr.bf16.gmra.mrb[0].mxu0 %v304
        %v340 = vpop.f32.mrb[0].mxu0
        %v341 = vadd.f32 %v289, %v340
        %v342 = vpop.f32.mrb[0].mxu0
        %v343 = vpop.f32.mrb[0].mxu0
        %v344 = vpop.f32.mrb[0].mxu0
        %345 = vdwg.mxu0
        %v346 = vpack.c.bf16 %v341, %v341
        %s347 = scalar_lea.vmem [#allocation6], 16
        %v348 = vld [vmem:[%s347] sm:$0xf]
        %v349 = vld [vmem:[%s347 + $0x4] sm:$0xf]
        %v350 = vld [vmem:[%s347 + $0x8] sm:$0xf]
        %v351 = vld [vmem:[%s347 + $0xc] sm:$0xf]
        %s352 = scalar_lea.vmem %s2, 1
        %v353 = vld [vmem:[%s352] sm:$0x1]
        %v355 = vlaneseq
        %v356 = vshrl.u32 %v355, 7
        %v357 = vsub.s32 0, %v356
        %v358 = vrot.slane %v353, %v357
        %v364 = vunpack.c.l.b16 %v348
        %v365 = vunpack.c.l.b16 %v349
        %v366 = vunpack.c.l.b16 %v350
        %v367 = vunpack.c.l.b16 %v351
        %v368 = vpack.c.b16 %v365, %v364
        %v369 = vpack.c.b16 %v367, %v366
        %372 = vmatprep.subr.bf16.mxu0 0
        %373 = vmatpush1.bf16.msra.mxu0 %v368
        %374 = vmatprep.subr.bf16.mxu0 0
        %375 = vmatpush1.bf16.msra.mxu0 %v369
        %376 = vmatprep.subr.bf16.mxu0 0
        %377 = vmatpush1.bf16.msra.mxu0 0
        %378 = vmatprep.subr.bf16.mxu0 0
        %379 = vmatpush1.bf16.msra.mxu0 0
        %380 = vmatprep.subr.bf16.mxu0 0
        %381 = vmatpush1.bf16.msra.mxu0 0
        %382 = vmatprep.subr.bf16.mxu0 0
        %383 = vmatpush1.bf16.msra.mxu0 0
        %384 = vmatprep.subr.bf16.mxu0 0
        %385 = vmatpush1.bf16.msra.mxu0 0
        %386 = vmatprep.subr.bf16.mxu0 0
        %387 = vmatpush1.bf16.msra.mxu0 0
        %388 = vmatprep.subr.bf16.mxu0 0
        %389 = vmatpush1.bf16.msra.mxu0 0
        %390 = vmatprep.subr.bf16.mxu0 0
        %391 = vmatpush1.bf16.msra.mxu0 0
        %392 = vmatprep.subr.bf16.mxu0 0
        %393 = vmatpush1.bf16.msra.mxu0 0
        %394 = vmatprep.subr.bf16.mxu0 0
        %395 = vmatpush1.bf16.msra.mxu0 0
        %396 = vmatprep.subr.bf16.mxu0 0
        %397 = vmatpush1.bf16.msra.mxu0 0
        %398 = vmatprep.subr.bf16.mxu0 0
        %399 = vmatpush1.bf16.msra.mxu0 0
        %400 = vmatprep.subr.bf16.mxu0 0
        %401 = vmatpush1.bf16.msra.mxu0 0
        %402 = vmatprep.subr.bf16.mxu0 0
        %403 = vmatpush1.bf16.msra.mxu0 0
        %404 = vmatprep.mubr.bf16.mxu0 0
        %405 = vmatmul.mubr.bf16.gmra.mrb[0].mxu0 %v304
        %v406 = vpop.f32.mrb[0].mxu0
        %v407 = vadd.f32 %v358, %v406
        %v408 = vpop.f32.mrb[0].mxu0
        %v409 = vpop.f32.mrb[0].mxu0
        %v410 = vpop.f32.mrb[0].mxu0
        %411 = vdwg.mxu0
        %v412 = vpack.c.bf16 %v407, %v407
        %s413 = scalar_lea.vmem [#allocation6], 32
        %v414 = vld [vmem:[%s413] sm:$0xf]
        %v415 = vld [vmem:[%s413 + $0x4] sm:$0xf]
        %v416 = vld [vmem:[%s413 + $0x8] sm:$0xf]
        %v417 = vld [vmem:[%s413 + $0xc] sm:$0xf]
        %s418 = scalar_lea.vmem %s2, 2
        %v419 = vld [vmem:[%s418] sm:$0x1]
        %v421 = vlaneseq
        %v422 = vshrl.u32 %v421, 7
        %v423 = vsub.s32 0, %v422
        %v424 = vrot.slane %v419, %v423
        %v430 = vunpack.c.l.b16 %v414
        %v431 = vunpack.c.l.b16 %v415
        %v432 = vunpack.c.l.b16 %v416
        %v433 = vunpack.c.l.b16 %v417
        %v434 = vpack.c.b16 %v431, %v430
        %v435 = vpack.c.b16 %v433, %v432
        %438 = vmatprep.subr.bf16.mxu0 0
        %439 = vmatpush1.bf16.msra.mxu0 %v434
        %440 = vmatprep.subr.bf16.mxu0 0
        %441 = vmatpush1.bf16.msra.mxu0 %v435
        %442 = vmatprep.subr.bf16.mxu0 0
        %443 = vmatpush1.bf16.msra.mxu0 0
        %444 = vmatprep.subr.bf16.mxu0 0
        %445 = vmatpush1.bf16.msra.mxu0 0
        %446 = vmatprep.subr.bf16.mxu0 0
        %447 = vmatpush1.bf16.msra.mxu0 0
        %448 = vmatprep.subr.bf16.mxu0 0
        %449 = vmatpush1.bf16.msra.mxu0 0
        %450 = vmatprep.subr.bf16.mxu0 0
        %451 = vmatpush1.bf16.msra.mxu0 0
        %452 = vmatprep.subr.bf16.mxu0 0
        %453 = vmatpush1.bf16.msra.mxu0 0
        %454 = vmatprep.subr.bf16.mxu0 0
        %455 = vmatpush1.bf16.msra.mxu0 0
        %456 = vmatprep.subr.bf16.mxu0 0
        %457 = vmatpush1.bf16.msra.mxu0 0
        %458 = vmatprep.subr.bf16.mxu0 0
        %459 = vmatpush1.bf16.msra.mxu0 0
        %460 = vmatprep.subr.bf16.mxu0 0
        %461 = vmatpush1.bf16.msra.mxu0 0
        %462 = vmatprep.subr.bf16.mxu0 0
        %463 = vmatpush1.bf16.msra.mxu0 0
        %464 = vmatprep.subr.bf16.mxu0 0
        %465 = vmatpush1.bf16.msra.mxu0 0
        %466 = vmatprep.subr.bf16.mxu0 0
        %467 = vmatpush1.bf16.msra.mxu0 0
        %468 = vmatprep.subr.bf16.mxu0 0
        %469 = vmatpush1.bf16.msra.mxu0 0
        %470 = vmatprep.mubr.bf16.mxu0 0
        %471 = vmatmul.mubr.bf16.gmra.mrb[0].mxu0 %v304
        %v472 = vpop.f32.mrb[0].mxu0
        %v473 = vadd.f32 %v424, %v472
        %v474 = vpop.f32.mrb[0].mxu0
        %v475 = vpop.f32.mrb[0].mxu0
        %v476 = vpop.f32.mrb[0].mxu0
        %477 = vdwg.mxu0
        %v478 = vpack.c.bf16 %v473, %v473
        %vm479 = vcmask 64512
        %v481 = vsel %vm479, %v346, 0
        %v484 = vsel %vm479, %v412, 0
        %486 = vmatprep.subr.bf16.mxu0 0
        %487 = vmatpush1.bf16.xpose.msra.mxu0 %v484
        %488 = vmatprep.subr.bf16.mxu0 0
        %489 = vmatpush1.bf16.xpose.msra.mxu0 0
        %490 = vmatprep.subr.bf16.mxu0 0
        %491 = vmatpush1.bf16.xpose.msra.mxu0 0
        %492 = vmatprep.subr.bf16.mxu0 0
        %493 = vmatpush1.bf16.xpose.msra.mxu0 0
        %494 = vmatprep.subr.bf16.mxu0 0
        %495 = vmatpush1.bf16.xpose.msra.mxu0 0
        %496 = vmatprep.subr.bf16.mxu0 0
        %497 = vmatpush1.bf16.xpose.msra.mxu0 0
        %498 = vmatprep.subr.bf16.mxu0 0
        %499 = vmatpush1.bf16.xpose.msra.mxu0 0
        %500 = vmatprep.subr.bf16.mxu0 0
        %501 = vmatpush1.bf16.xpose.msra.mxu0 0
        %502 = vmatprep.subr.bf16.mxu0 0
        %503 = vmatpush1.bf16.xpose.msra.mxu0 0
        %504 = vmatprep.subr.bf16.mxu0 0
        %505 = vmatpush1.bf16.xpose.msra.mxu0 0
        %506 = vmatprep.subr.bf16.mxu0 0
        %507 = vmatpush1.bf16.xpose.msra.mxu0 0
        %508 = vmatprep.subr.bf16.mxu0 0
        %509 = vmatpush1.bf16.xpose.msra.mxu0 0
        %510 = vmatprep.subr.bf16.mxu0 0
        %511 = vmatpush1.bf16.xpose.msra.mxu0 0
        %512 = vmatprep.subr.bf16.mxu0 0
        %513 = vmatpush1.bf16.xpose.msra.mxu0 0
        %514 = vmatprep.subr.bf16.mxu0 0
        %515 = vmatpush1.bf16.xpose.msra.mxu0 0
        %516 = vmatprep.subr.bf16.mxu0 0
        %517 = vmatpush1.bf16.xpose.msra.mxu0 0
        %518 = vmatprep.mubr.bf16.mxu0 0
        %519 = vmatmul.mubr.bf16.gmra.mrb[0].mxu0 %v481
        %v520 = vpop.f32.mrb[0].mxu0
        %v521 = vadd.f32 0.0, %v520
        %v522 = vpop.f32.mrb[0].mxu0
        %v523 = vpop.f32.mrb[0].mxu0
        %v524 = vpop.f32.mrb[0].mxu0
        %525 = vdwg.mxu0
        %v526 = vsel %vm479, %v521, -inf
        %527 = vmax.xlane.f32.xlu0 %v526
        %v528 = vpop.xlane.xlu0 %527
        %v529 = vsub.f32 %v521, %v528
        %v530 = vmul.f32 %v529, 1.442695
        %v531 = vpow.pop %v530
        %v532 = vsel %vm479, %v531, 0.0
        %533 = vadd.xlane.f32.xlu0 %v532
        %v534 = vpop.xlane.xlu0 %533
        %v535 = vrcp.pop %v534
        %v536 = vmul.f32 %v531, %v535
        %v537 = vpack.c.bf16 %v536, %v536
        %v539 = vsel %vm479, %v537, 0
        %vm541 = vcmask 1043456
        %v543 = vsel %vm541, %v478, 0
        %545 = vmatprep.subr.bf16.mxu0 0
        %546 = vmatpush1.bf16.msra.mxu0 %v543
        %547 = vmatprep.subr.bf16.mxu0 0
        %548 = vmatpush1.bf16.msra.mxu0 0
        %549 = vmatprep.subr.bf16.mxu0 0
        %550 = vmatpush1.bf16.msra.mxu0 0
        %551 = vmatprep.subr.bf16.mxu0 0
        %552 = vmatpush1.bf16.msra.mxu0 0
        %553 = vmatprep.subr.bf16.mxu0 0
        %554 = vmatpush1.bf16.msra.mxu0 0
        %555 = vmatprep.subr.bf16.mxu0 0
        %556 = vmatpush1.bf16.msra.mxu0 0
        %557 = vmatprep.subr.bf16.mxu0 0
        %558 = vmatpush1.bf16.msra.mxu0 0
        %559 = vmatprep.subr.bf16.mxu0 0
        %560 = vmatpush1.bf16.msra.mxu0 0
        %561 = vmatprep.subr.bf16.mxu0 0
        %562 = vmatpush1.bf16.msra.mxu0 0
        %563 = vmatprep.subr.bf16.mxu0 0
        %564 = vmatpush1.bf16.msra.mxu0 0
        %565 = vmatprep.subr.bf16.mxu0 0
        %566 = vmatpush1.bf16.msra.mxu0 0
        %567 = vmatprep.subr.bf16.mxu0 0
        %568 = vmatpush1.bf16.msra.mxu0 0
        %569 = vmatprep.subr.bf16.mxu0 0
        %570 = vmatpush1.bf16.msra.mxu0 0
        %571 = vmatprep.subr.bf16.mxu0 0
        %572 = vmatpush1.bf16.msra.mxu0 0
        %573 = vmatprep.subr.bf16.mxu0 0
        %574 = vmatpush1.bf16.msra.mxu0 0
        %575 = vmatprep.subr.bf16.mxu0 0
        %576 = vmatpush1.bf16.msra.mxu0 0
        %577 = vmatprep.mubr.bf16.mxu0 0
        %578 = vmatmul.mubr.bf16.gmra.mrb[0].mxu0 %v539
        %v579 = vpop.f32.mrb[0].mxu0
        %v580 = vadd.f32 0.0, %v579
        %v581 = vpop.f32.mrb[0].mxu0
        %v582 = vpop.f32.mrb[0].mxu0
        %v583 = vpop.f32.mrb[0].mxu0
        %584 = vdwg.mxu0
        %v585 = vpack.c.bf16 %v580, %v580
        %587 = vrot.lane.b32.xlu0 %v346, 120
        %v588 = vpop.permute.xlu0 %587
        %590 = vrot.lane.b32.xlu0 %v412, 120
        %v591 = vpop.permute.xlu0 %590
        %v593 = vsel %vm479, %v588, 0
        %v596 = vsel %vm479, %v591, 0
        %598 = vmatprep.subr.bf16.mxu0 0
        %599 = vmatpush1.bf16.xpose.msra.mxu0 %v596
        %600 = vmatprep.subr.bf16.mxu0 0
        %601 = vmatpush1.bf16.xpose.msra.mxu0 0
        %602 = vmatprep.subr.bf16.mxu0 0
        %603 = vmatpush1.bf16.xpose.msra.mxu0 0
        %604 = vmatprep.subr.bf16.mxu0 0
        %605 = vmatpush1.bf16.xpose.msra.mxu0 0
        %606 = vmatprep.subr.bf16.mxu0 0
        %607 = vmatpush1.bf16.xpose.msra.mxu0 0
        %608 = vmatprep.subr.bf16.mxu0 0
        %609 = vmatpush1.bf16.xpose.msra.mxu0 0
        %610 = vmatprep.subr.bf16.mxu0 0
        %611 = vmatpush1.bf16.xpose.msra.mxu0 0
        %612 = vmatprep.subr.bf16.mxu0 0
        %613 = vmatpush1.bf16.xpose.msra.mxu0 0
        %614 = vmatprep.subr.bf16.mxu0 0
        %615 = vmatpush1.bf16.xpose.msra.mxu0 0
        %616 = vmatprep.subr.bf16.mxu0 0
        %617 = vmatpush1.bf16.xpose.msra.mxu0 0
        %618 = vmatprep.subr.bf16.mxu0 0
        %619 = vmatpush1.bf16.xpose.msra.mxu0 0
        %620 = vmatprep.subr.bf16.mxu0 0
        %621 = vmatpush1.bf16.xpose.msra.mxu0 0
        %622 = vmatprep.subr.bf16.mxu0 0
        %623 = vmatpush1.bf16.xpose.msra.mxu0 0
        %624 = vmatprep.subr.bf16.mxu0 0
        %625 = vmatpush1.bf16.xpose.msra.mxu0 0
        %626 = vmatprep.subr.bf16.mxu0 0
        %627 = vmatpush1.bf16.xpose.msra.mxu0 0
        %628 = vmatprep.subr.bf16.mxu0 0
        %629 = vmatpush1.bf16.xpose.msra.mxu0 0
        %630 = vmatprep.mubr.bf16.mxu0 0
        %631 = vmatmul.mubr.bf16.gmra.mrb[0].mxu0 %v593
        %v632 = vpop.f32.mrb[0].mxu0
        %v633 = vadd.f32 0.0, %v632
        %v634 = vpop.f32.mrb[0].mxu0
        %v635 = vpop.f32.mrb[0].mxu0
        %v636 = vpop.f32.mrb[0].mxu0
        %637 = vdwg.mxu0
        %v638 = vsel %vm479, %v633, -inf
        %639 = vmax.xlane.f32.xlu0 %v638
        %v640 = vpop.xlane.xlu0 %639
        %v641 = vsub.f32 %v633, %v640
        %v642 = vmul.f32 %v641, 1.442695
        %v643 = vpow.pop %v642
        %v644 = vsel %vm479, %v643, 0.0
        %645 = vadd.xlane.f32.xlu0 %v644
        %v646 = vpop.xlane.xlu0 %645
        %v647 = vrcp.pop %v646
        %v648 = vmul.f32 %v643, %v647
        %v649 = vpack.c.bf16 %v648, %v648
        %651 = vrot.lane.b32.xlu0 %v478, 120
        %v652 = vpop.permute.xlu0 %651
        %v654 = vsel %vm479, %v649, 0
        %v657 = vsel %vm541, %v652, 0
        %659 = vmatprep.subr.bf16.mxu0 0
        %660 = vmatpush1.bf16.msra.mxu0 %v657
        %661 = vmatprep.subr.bf16.mxu0 0
        %662 = vmatpush1.bf16.msra.mxu0 0
        %663 = vmatprep.subr.bf16.mxu0 0
        %664 = vmatpush1.bf16.msra.mxu0 0
        %665 = vmatprep.subr.bf16.mxu0 0
        %666 = vmatpush1.bf16.msra.mxu0 0
        %667 = vmatprep.subr.bf16.mxu0 0
        %668 = vmatpush1.bf16.msra.mxu0 0
        %669 = vmatprep.subr.bf16.mxu0 0
        %670 = vmatpush1.bf16.msra.mxu0 0
        %671 = vmatprep.subr.bf16.mxu0 0
        %672 = vmatpush1.bf16.msra.mxu0 0
        %673 = vmatprep.subr.bf16.mxu0 0
        %674 = vmatpush1.bf16.msra.mxu0 0
        %675 = vmatprep.subr.bf16.mxu0 0
        %676 = vmatpush1.bf16.msra.mxu0 0
        %677 = vmatprep.subr.bf16.mxu0 0
        %678 = vmatpush1.bf16.msra.mxu0 0
        %679 = vmatprep.subr.bf16.mxu0 0
        %680 = vmatpush1.bf16.msra.mxu0 0
        %681 = vmatprep.subr.bf16.mxu0 0
        %682 = vmatpush1.bf16.msra.mxu0 0
        %683 = vmatprep.subr.bf16.mxu0 0
        %684 = vmatpush1.bf16.msra.mxu0 0
        %685 = vmatprep.subr.bf16.mxu0 0
        %686 = vmatpush1.bf16.msra.mxu0 0
        %687 = vmatprep.subr.bf16.mxu0 0
        %688 = vmatpush1.bf16.msra.mxu0 0
        %689 = vmatprep.subr.bf16.mxu0 0
        %690 = vmatpush1.bf16.msra.mxu0 0
        %691 = vmatprep.mubr.bf16.mxu0 0
        %692 = vmatmul.mubr.bf16.gmra.mrb[0].mxu0 %v654
        %v693 = vpop.f32.mrb[0].mxu0
        %v694 = vadd.f32 0.0, %v693
        %v695 = vpop.f32.mrb[0].mxu0
        %v696 = vpop.f32.mrb[0].mxu0
        %v697 = vpop.f32.mrb[0].mxu0
        %698 = vdwg.mxu0
        %v699 = vpack.c.bf16 %v694, %v694
        %700 = vrot.lane.b32.xlu0 %v346, 112
        %v701 = vpop.permute.xlu0 %700
        %702 = vrot.lane.b32.xlu0 %v412, 112
        %v703 = vpop.permute.xlu0 %702
        %v705 = vsel %vm479, %v701, 0
        %v708 = vsel %vm479, %v703, 0
        %710 = vmatprep.subr.bf16.mxu0 0
        %711 = vmatpush1.bf16.xpose.msra.mxu0 %v708
        %712 = vmatprep.subr.bf16.mxu0 0
        %713 = vmatpush1.bf16.xpose.msra.mxu0 0
        %714 = vmatprep.subr.bf16.mxu0 0
        %715 = vmatpush1.bf16.xpose.msra.mxu0 0
        %716 = vmatprep.subr.bf16.mxu0 0
        %717 = vmatpush1.bf16.xpose.msra.mxu0 0
        %718 = vmatprep.subr.bf16.mxu0 0
        %719 = vmatpush1.bf16.xpose.msra.mxu0 0
        %720 = vmatprep.subr.bf16.mxu0 0
        %721 = vmatpush1.bf16.xpose.msra.mxu0 0
        %722 = vmatprep.subr.bf16.mxu0 0
        %723 = vmatpush1.bf16.xpose.msra.mxu0 0
        %724 = vmatprep.subr.bf16.mxu0 0
        %725 = vmatpush1.bf16.xpose.msra.mxu0 0
        %726 = vmatprep.subr.bf16.mxu0 0
        %727 = vmatpush1.bf16.xpose.msra.mxu0 0
        %728 = vmatprep.subr.bf16.mxu0 0
        %729 = vmatpush1.bf16.xpose.msra.mxu0 0
        %730 = vmatprep.subr.bf16.mxu0 0
        %731 = vmatpush1.bf16.xpose.msra.mxu0 0
        %732 = vmatprep.subr.bf16.mxu0 0
        %733 = vmatpush1.bf16.xpose.msra.mxu0 0
        %734 = vmatprep.subr.bf16.mxu0 0
        %735 = vmatpush1.bf16.xpose.msra.mxu0 0
        %736 = vmatprep.subr.bf16.mxu0 0
        %737 = vmatpush1.bf16.xpose.msra.mxu0 0
        %738 = vmatprep.subr.bf16.mxu0 0
        %739 = vmatpush1.bf16.xpose.msra.mxu0 0
        %740 = vmatprep.subr.bf16.mxu0 0
        %741 = vmatpush1.bf16.xpose.msra.mxu0 0
        %742 = vmatprep.mubr.bf16.mxu0 0
        %743 = vmatmul.mubr.bf16.gmra.mrb[0].mxu0 %v705
        %v744 = vpop.f32.mrb[0].mxu0
        %v745 = vadd.f32 0.0, %v744
        %v746 = vpop.f32.mrb[0].mxu0
        %v747 = vpop.f32.mrb[0].mxu0
        %v748 = vpop.f32.mrb[0].mxu0
        %749 = vdwg.mxu0
        %v750 = vsel %vm479, %v745, -inf
        %751 = vmax.xlane.f32.xlu0 %v750
        %v752 = vpop.xlane.xlu0 %751
        %v753 = vsub.f32 %v745, %v752
        %v754 = vmul.f32 %v753, 1.442695
        %v755 = vpow.pop %v754
        %v756 = vsel %vm479, %v755, 0.0
        %757 = vadd.xlane.f32.xlu0 %v756
        %v758 = vpop.xlane.xlu0 %757
        %v759 = vrcp.pop %v758
        %v760 = vmul.f32 %v755, %v759
        %v761 = vpack.c.bf16 %v760, %v760
        %762 = vrot.lane.b32.xlu0 %v478, 112
        %v763 = vpop.permute.xlu0 %762
        %v765 = vsel %vm479, %v761, 0
        %v768 = vsel %vm541, %v763, 0
        %770 = vmatprep.subr.bf16.mxu0 0
        %771 = vmatpush1.bf16.msra.mxu0 %v768
        %772 = vmatprep.subr.bf16.mxu0 0
        %773 = vmatpush1.bf16.msra.mxu0 0
        %774 = vmatprep.subr.bf16.mxu0 0
        %775 = vmatpush1.bf16.msra.mxu0 0
        %776 = vmatprep.subr.bf16.mxu0 0
        %777 = vmatpush1.bf16.msra.mxu0 0
        %778 = vmatprep.subr.bf16.mxu0 0
        %779 = vmatpush1.bf16.msra.mxu0 0
        %780 = vmatprep.subr.bf16.mxu0 0
        %781 = vmatpush1.bf16.msra.mxu0 0
        %782 = vmatprep.subr.bf16.mxu0 0
        %783 = vmatpush1.bf16.msra.mxu0 0
        %784 = vmatprep.subr.bf16.mxu0 0
        %785 = vmatpush1.bf16.msra.mxu0 0
        %786 = vmatprep.subr.bf16.mxu0 0
        %787 = vmatpush1.bf16.msra.mxu0 0
        %788 = vmatprep.subr.bf16.mxu0 0
        %789 = vmatpush1.bf16.msra.mxu0 0
        %790 = vmatprep.subr.bf16.mxu0 0
        %791 = vmatpush1.bf16.msra.mxu0 0
        %792 = vmatprep.subr.bf16.mxu0 0
        %793 = vmatpush1.bf16.msra.mxu0 0
        %794 = vmatprep.subr.bf16.mxu0 0
        %795 = vmatpush1.bf16.msra.mxu0 0
        %796 = vmatprep.subr.bf16.mxu0 0
        %797 = vmatpush1.bf16.msra.mxu0 0
        %798 = vmatprep.subr.bf16.mxu0 0
        %799 = vmatpush1.bf16.msra.mxu0 0
        %800 = vmatprep.subr.bf16.mxu0 0
        %801 = vmatpush1.bf16.msra.mxu0 0
        %802 = vmatprep.mubr.bf16.mxu0 0
        %803 = vmatmul.mubr.bf16.gmra.mrb[0].mxu0 %v765
        %v804 = vpop.f32.mrb[0].mxu0
        %v805 = vadd.f32 0.0, %v804
        %v806 = vpop.f32.mrb[0].mxu0
        %v807 = vpop.f32.mrb[0].mxu0
        %v808 = vpop.f32.mrb[0].mxu0
        %809 = vdwg.mxu0
        %v810 = vpack.c.bf16 %v805, %v805
        %811 = vrot.lane.b32.xlu0 %v346, 104
        %v812 = vpop.permute.xlu0 %811
        %813 = vrot.lane.b32.xlu0 %v412, 104
        %v814 = vpop.permute.xlu0 %813
        %v816 = vsel %vm479, %v812, 0
        %v819 = vsel %vm479, %v814, 0
        %821 = vmatprep.subr.bf16.mxu0 0
        %822 = vmatpush1.bf16.xpose.msra.mxu0 %v819
        %823 = vmatprep.subr.bf16.mxu0 0
        %824 = vmatpush1.bf16.xpose.msra.mxu0 0
        %825 = vmatprep.subr.bf16.mxu0 0
        %826 = vmatpush1.bf16.xpose.msra.mxu0 0
        %827 = vmatprep.subr.bf16.mxu0 0
        %828 = vmatpush1.bf16.xpose.msra.mxu0 0
        %829 = vmatprep.subr.bf16.mxu0 0
        %830 = vmatpush1.bf16.xpose.msra.mxu0 0
        %831 = vmatprep.subr.bf16.mxu0 0
        %832 = vmatpush1.bf16.xpose.msra.mxu0 0
        %833 = vmatprep.subr.bf16.mxu0 0
        %834 = vmatpush1.bf16.xpose.msra.mxu0 0
        %835 = vmatprep.subr.bf16.mxu0 0
        %836 = vmatpush1.bf16.xpose.msra.mxu0 0
        %837 = vmatprep.subr.bf16.mxu0 0
        %838 = vmatpush1.bf16.xpose.msra.mxu0 0
        %839 = vmatprep.subr.bf16.mxu0 0
        %840 = vmatpush1.bf16.xpose.msra.mxu0 0
        %841 = vmatprep.subr.bf16.mxu0 0
        %842 = vmatpush1.bf16.xpose.msra.mxu0 0
        %843 = vmatprep.subr.bf16.mxu0 0
        %844 = vmatpush1.bf16.xpose.msra.mxu0 0
        %845 = vmatprep.subr.bf16.mxu0 0
        %846 = vmatpush1.bf16.xpose.msra.mxu0 0
        %847 = vmatprep.subr.bf16.mxu0 0
        %848 = vmatpush1.bf16.xpose.msra.mxu0 0
        %849 = vmatprep.subr.bf16.mxu0 0
        %850 = vmatpush1.bf16.xpose.msra.mxu0 0
        %851 = vmatprep.subr.bf16.mxu0 0
        %852 = vmatpush1.bf16.xpose.msra.mxu0 0
        %853 = vmatprep.mubr.bf16.mxu0 0
        %854 = vmatmul.mubr.bf16.gmra.mrb[0].mxu0 %v816
        %v855 = vpop.f32.mrb[0].mxu0
        %v856 = vadd.f32 0.0, %v855
        %v857 = vpop.f32.mrb[0].mxu0
        %v858 = vpop.f32.mrb[0].mxu0
        %v859 = vpop.f32.mrb[0].mxu0
        %860 = vdwg.mxu0
        %v861 = vsel %vm479, %v856, -inf
        %862 = vmax.xlane.f32.xlu0 %v861
        %v863 = vpop.xlane.xlu0 %862
        %v864 = vsub.f32 %v856, %v863
        %v865 = vmul.f32 %v864, 1.442695
        %v866 = vpow.pop %v865
        %v867 = vsel %vm479, %v866, 0.0
        %868 = vadd.xlane.f32.xlu0 %v867
        %v869 = vpop.xlane.xlu0 %868
        %v870 = vrcp.pop %v869
        %v871 = vmul.f32 %v866, %v870
        %v872 = vpack.c.bf16 %v871, %v871
        %873 = vrot.lane.b32.xlu0 %v478, 104
        %v874 = vpop.permute.xlu0 %873
        %v876 = vsel %vm479, %v872, 0
        %v879 = vsel %vm541, %v874, 0
        %881 = vmatprep.subr.bf16.mxu0 0
        %882 = vmatpush1.bf16.msra.mxu0 %v879
        %883 = vmatprep.subr.bf16.mxu0 0
        %884 = vmatpush1.bf16.msra.mxu0 0
        %885 = vmatprep.subr.bf16.mxu0 0
        %886 = vmatpush1.bf16.msra.mxu0 0
        %887 = vmatprep.subr.bf16.mxu0 0
        %888 = vmatpush1.bf16.msra.mxu0 0
        %889 = vmatprep.subr.bf16.mxu0 0
        %890 = vmatpush1.bf16.msra.mxu0 0
        %891 = vmatprep.subr.bf16.mxu0 0
        %892 = vmatpush1.bf16.msra.mxu0 0
        %893 = vmatprep.subr.bf16.mxu0 0
        %894 = vmatpush1.bf16.msra.mxu0 0
        %895 = vmatprep.subr.bf16.mxu0 0
        %896 = vmatpush1.bf16.msra.mxu0 0
        %897 = vmatprep.subr.bf16.mxu0 0
        %898 = vmatpush1.bf16.msra.mxu0 0
        %899 = vmatprep.subr.bf16.mxu0 0
        %900 = vmatpush1.bf16.msra.mxu0 0
        %901 = vmatprep.subr.bf16.mxu0 0
        %902 = vmatpush1.bf16.msra.mxu0 0
        %903 = vmatprep.subr.bf16.mxu0 0
        %904 = vmatpush1.bf16.msra.mxu0 0
        %905 = vmatprep.subr.bf16.mxu0 0
        %906 = vmatpush1.bf16.msra.mxu0 0
        %907 = vmatprep.subr.bf16.mxu0 0
        %908 = vmatpush1.bf16.msra.mxu0 0
        %909 = vmatprep.subr.bf16.mxu0 0
        %910 = vmatpush1.bf16.msra.mxu0 0
        %911 = vmatprep.subr.bf16.mxu0 0
        %912 = vmatpush1.bf16.msra.mxu0 0
        %913 = vmatprep.mubr.bf16.mxu0 0
        %914 = vmatmul.mubr.bf16.gmra.mrb[0].mxu0 %v876
        %v915 = vpop.f32.mrb[0].mxu0
        %v916 = vadd.f32 0.0, %v915
        %v917 = vpop.f32.mrb[0].mxu0
        %v918 = vpop.f32.mrb[0].mxu0
        %v919 = vpop.f32.mrb[0].mxu0
        %920 = vdwg.mxu0
        %v921 = vpack.c.bf16 %v916, %v916
        %923 = vrot.lane.b32.xlu0 %v699, 8
        %v924 = vpop.permute.xlu0 %923
        %926 = vrot.lane.b32.xlu0 %v810, 16
        %v927 = vpop.permute.xlu0 %926
        %929 = vrot.lane.b32.xlu0 %v921, 24
        %v930 = vpop.permute.xlu0 %929
        %v933 = vsel %vm479, %v585, %v924
        %vm934 = vcmask 130048
        %v936 = vsel %vm934, %v933, %v927
        %vm937 = vcmask 195584
        %v939 = vsel %vm937, %v936, %v930
        %v940 = vld [vmem:[#allocation2] sm:$0xff]
        %v941 = vld [vmem:[#allocation8] sm:$0xf]
        %v942 = vld [vmem:[#allocation8 + $0x4] sm:$0xf]
        %v943 = vld [vmem:[#allocation8 + $0x8] sm:$0xf]
        %v944 = vld [vmem:[#allocation8 + $0xc] sm:$0xf]
        %v949 = vunpack.c.l.b16 %v941
        %v950 = vunpack.c.l.b16 %v942
        %v951 = vunpack.c.l.b16 %v943
        %v952 = vunpack.c.l.b16 %v944
        %v953 = vpack.c.b16 %v950, %v949
        %v954 = vpack.c.b16 %v952, %v951
        %v957 = vsel %vm278, %v939, 0
        %959 = vmatprep.subr.bf16.mxu0 0
        %960 = vmatpush1.bf16.msra.mxu0 %v953
        %961 = vmatprep.subr.bf16.mxu0 0
        %962 = vmatpush1.bf16.msra.mxu0 %v954
        %963 = vmatprep.subr.bf16.mxu0 0
        %964 = vmatpush1.bf16.msra.mxu0 0
        %965 = vmatprep.subr.bf16.mxu0 0
        %966 = vmatpush1.bf16.msra.mxu0 0
        %967 = vmatprep.subr.bf16.mxu0 0
        %968 = vmatpush1.bf16.msra.mxu0 0
        %969 = vmatprep.subr.bf16.mxu0 0
        %970 = vmatpush1.bf16.msra.mxu0 0
        %971 = vmatprep.subr.bf16.mxu0 0
        %972 = vmatpush1.bf16.msra.mxu0 0
        %973 = vmatprep.subr.bf16.mxu0 0
        %974 = vmatpush1.bf16.msra.mxu0 0
        %975 = vmatprep.subr.bf16.mxu0 0
        %976 = vmatpush1.bf16.msra.mxu0 0
        %977 = vmatprep.subr.bf16.mxu0 0
        %978 = vmatpush1.bf16.msra.mxu0 0
        %979 = vmatprep.subr.bf16.mxu0 0
        %980 = vmatpush1.bf16.msra.mxu0 0
        %981 = vmatprep.subr.bf16.mxu0 0
        %982 = vmatpush1.bf16.msra.mxu0 0
        %983 = vmatprep.subr.bf16.mxu0 0
        %984 = vmatpush1.bf16.msra.mxu0 0
        %985 = vmatprep.subr.bf16.mxu0 0
        %986 = vmatpush1.bf16.msra.mxu0 0
        %987 = vmatprep.subr.bf16.mxu0 0
        %988 = vmatpush1.bf16.msra.mxu0 0
        %989 = vmatprep.subr.bf16.mxu0 0
        %990 = vmatpush1.bf16.msra.mxu0 0
        %991 = vmatprep.mubr.bf16.mxu0 0
        %992 = vmatmul.mubr.bf16.gmra.mrb[0].mxu0 %v957
        %v993 = vpop.f32.mrb[0].mxu0
        %v994 = vadd.f32 0.0, %v993
        %v995 = vpop.f32.mrb[0].mxu0
        %v996 = vpop.f32.mrb[0].mxu0
        %v997 = vpop.f32.mrb[0].mxu0
        %998 = vdwg.mxu0
        %v999 = vadd.f32 %v940, %v994
        %1000 = vst.msk [vmem:[#allocation2] sm:$0xff] %vm278, %v999
        %v1001 = vld [vmem:[#allocation2] sm:$0xff]
        %1002 = vst.msk [vmem:[%s268] sm:$0xff] %vm278, %v1001
        %s1003 = sand.u32 %s141, 1
        %s1004 = scalar_lea.sflag [#allocation5], %s1003
        %s1005 = sand.u32 %s141, 1
        %s1006 = smul.addr %s1005, 8
        %s1007 = scalar_lea.vmem [#allocation9], %s1006
        // Predicated region
        $region53: #{tpu_custom_call.1} parent=39 // pred_check
          %p1008 = pneg %p151
        $region54: #{tpu_custom_call.1} parent=39 // pred_check_branch
          %1010 = sbr.rel (%p1008) target = $region56
        $region55: #{tpu_custom_call.1} parent=39 // pred_region
          %s1012 = ssub.s32 128, 128
          %1013 = vsyncadd %s1004, %s1012
          %s1014 = smul.addr %s23, 128
          %s1015 = scalar_lea.hbm %s5, %s1014
          %s1017 = sshll.u32 %s1007, 4
          %s1018 = int_to_ptr.vmem [resolvable:$true] %s1017
          %1020 = dma.vmem_to_hbm [thread:$0]  %s1018, 128, %s1015, %s1004
        $region56: #{tpu_custom_call.1} parent=39 // pred_fallthru
          _
      $region40: #{tpu_custom_call.1} parent=5 // pred_fallthru
        _
      %p1021 = scmp.le.s32.totalorder 2, %s18
      // Predicated region
      $region57: #{tpu_custom_call.1} parent=5 // pred_check
        %p1022 = pneg %p1021
      $region58: #{tpu_custom_call.1} parent=5 // pred_check_branch
        %1024 = sbr.rel (%p1022) target = $region60
      $region59: #{tpu_custom_call.1} parent=5 // pred_region
        %s1025 = ssub.s32 %s18, 2
        // Predicated region
        $region61: #{tpu_custom_call.1} parent=59 // pred_check
          %p1026 = pneg %p157
        $region62: #{tpu_custom_call.1} parent=59 // pred_check_branch
          %1028 = sbr.rel (%p1026) target = $region64
        $region63: #{tpu_custom_call.1} parent=59 // pred_region
          %s1029 = sand.u32 %s142, 1
          %s1030 = scalar_lea.sflag [#allocation5], %s1029
          %s1031 = sand.u32 %s142, 1
          %s1032 = smul.addr %s1031, 8
          %s1033 = scalar_lea.vmem [#allocation9], %s1032
          %1034 = dma.done %s1030, 128
        $region64: #{tpu_custom_call.1} parent=59 // pred_fallthru
          _
      $region60: #{tpu_custom_call.1} parent=5 // pred_fallthru
        _
    $region6: #{tpu_custom_call.1} parent=1 // loop_footer
      %s22 = sadd.s32 1, %s18
    $region7: #{tpu_custom_call.1} parent=1 // loop_footer_branch
      %17 = sbr.rel target = $region3
    $region8: #{tpu_custom_call.1} parent=1 // loop_exit
      _
    %1035 = vsyncpa [#allocation4], 1
    %s1036 = scalar_lea.sflag [#allocation4], 1
    %1037 = vsyncpa %s1036, 1
    %1038 = vsyncpa [#allocation7], 1
    %1039 = vsyncpa [#allocation5], 1
    %s1040 = scalar_lea.sflag [#allocation5], 1
    %1041 = vsyncpa %s1040, 1

</llo_original>
